<compile_context>
chip_gen: v6e
topology: v6e:2x2x1
jax: 0.10.0
libtpu: 0.0.40
codegen_flags: <defaults>
</compile_context>

<pallas_src>
import functools
import numpy as np
import jax
import jax.numpy as jnp
from jax.experimental import pallas as pl
from jax.experimental.pallas import tpu as pltpu

# ---------------- irreps bookkeeping (plain Python glue) ----------------
IRREPS_SCALARS = [(8, 0)]            # (mul, l)
IRREPS_GATES   = [(8, 0)]
IRREPS_GATED   = [(4, 1), (4, 2)]

def _dim(irreps):
    return sum(m * (2 * l + 1) for m, l in irreps)

SCALARS_DIM = _dim(IRREPS_SCALARS)             # 8
GATES_DIM   = _dim(IRREPS_GATES)               # 8
GATED_DIM   = _dim(IRREPS_GATED)               # 32
NUM_GATED   = sum(m for m, _ in IRREPS_GATED)  # 8  (== GATES_DIM, one gate per irrep)
D_IN  = SCALARS_DIM + GATES_DIM + GATED_DIM    # 48
D_OUT = SCALARS_DIM + GATED_DIM                # 40
assert GATES_DIM == NUM_GATED, "num gates must equal num gated irreps"

_LANES = 128
_SUBLANES = 8


def _round_up(x, m):
    return ((x + m - 1) // m) * m


def _gated_dims():
    """Per gated-irrep component counts, e.g. [3,3,3,3,5,5,5,5]."""
    out = []
    for mul, l in IRREPS_GATED:
        out += [2 * l + 1] * mul
    return out


# ---------------- normalize2mom constants (deterministic, host-side) ----------------
def _np_sigmoid(z):
    return 1.0 / (1.0 + np.exp(-z))


def _np_silu(z):
    return z * _np_sigmoid(z)


def _normalize2mom_const(act):
    """e3nn normalize2mom: c such that E[(c*act(z))^2] = 1, z ~ N(0,1).

    Computed with Gauss-Hermite quadrature (deterministic; e3nn itself uses a
    1e6-sample Monte-Carlo estimate, so values agree to ~1e-3 relative)."""
    x, w = np.polynomial.hermite.hermgauss(100)
    z = np.sqrt(2.0) * x
    second_moment = float(np.sum(w * act(z) ** 2) / np.sqrt(np.pi))
    return float(1.0 / np.sqrt(second_moment))


# ---------------- host-built structure constants ----------------
def _gate_expand_matrix_np():
    """(NUM_GATED, GATED_DIM) 0/1 matrix: gate i -> its irrep's components."""
    e = np.zeros((NUM_GATED, GATED_DIM), np.float32)
    row, col = 0, 0
    for d in _gated_dims():
        e[row, col:col + d] = 1.0
        row += 1
        col += d
    return e


@functools.lru_cache(maxsize=None)
def _packed_constants(r, c_scalar, c_gate):
    """Column maps for the packed (r logical rows per VMEM row) layout.

    gsrc[c]  : source column of the gate scalar for gated columns, identity else
    scale[c] : c_scalar for scalar cols, c_gate for gated cols, 0 for gate cols
    osrc[c]  : for c < 40*r, which input column lands at output column c
    """
    w = D_IN * r
    gsrc = np.arange(w, dtype=np.int32)
    scale = np.zeros((w,), dtype=np.float32)
    osrc = np.zeros((w,), dtype=np.int32)
    out_cols = []
    for j in range(r):
        base = j * D_IN
        scale[base:base + SCALARS_DIM] = c_scalar
        col = base + SCALARS_DIM + GATES_DIM
        gate_col = base + SCALARS_DIM
        for d in _gated_dims():
            gsrc[col:col + d] = gate_col
            scale[col:col + d] = c_gate
            col += d
            gate_col += 1
        out_cols += list(range(base, base + SCALARS_DIM))
        out_cols += list(range(base + SCALARS_DIM + GATES_DIM, base + D_IN))
    osrc[:len(out_cols)] = np.asarray(out_cols, np.int32)
    return (jnp.asarray(gsrc.reshape(1, w)),
            jnp.asarray(scale.reshape(1, w)),
            jnp.asarray(osrc.reshape(1, w)))


# ---------------- tile sizing (VMEM-footprint based, generation-safe) ----------------
def _pick_block_rows(rows, req_rows, in_itemsize, out_itemsize):
    # Per block-row VMEM bytes: lane-padded (to 128) double-buffered in+out plus
    # ~8 f32 temporaries of headroom for the elementwise chain.
    per_row = _LANES * (2 * (in_itemsize + out_itemsize) + 8 * 4)
    budget = 24 * 1024 * 1024                      # safe on v5e/v6e/v7x
    cap_vmem = max(_SUBLANES, (budget // per_row) // _SUBLANES * _SUBLANES)
    # Keep >= 2 grid steps when there is enough work (megacore / v7x dual-TC).
    cap_steps = max(_SUBLANES, _round_up(pl.cdiv(rows, 2), _SUBLANES))
    tb = max(_SUBLANES, min(_round_up(int(req_rows), _SUBLANES), cap_vmem, cap_steps))
    if tb >= rows:
        tb = rows                                   # single block == full array dims
    vmem_limit = int(min(48 * 1024 * 1024,
                         max(32 * 1024 * 1024, per_row * max(tb, 1) * 3 // 2)))
    return tb, vmem_limit


# ---------------- primary kernel: dense compute + XLU lane gathers ----------------
def _gate_kernel_gather(gsrc_ref, scale_ref, osrc_ref, x_ref, o_ref, *, w_out):
    x = x_ref[...].astype(jnp.float32)                         # (TB, W_in) f32 compute
    sg = jax.nn.sigmoid(x)                                     # dense over all lanes
    # Gate broadcast: gate_b[:, c] = sg[:, gsrc[c]]  (identity for scalar columns,
    # so x * gate_b is silu there).  Constant-map lane gather -> XLU, MXU-free.
    gate_b = jnp.take_along_axis(
        sg, jnp.broadcast_to(gsrc_ref[...], x.shape), axis=-1,
        mode="promise_in_bounds")
    # scalar cols: x*sigmoid(x)*c_scalar ; gated cols: gated*gate*c_gate ; gate cols: 0
    val = x * gate_b * scale_ref[...]
    # Drop the gate columns / compact to the output layout with a second lane gather.
    packed = jnp.take_along_axis(
        val, jnp.broadcast_to(osrc_ref[...], x.shape), axis=-1,
        mode="promise_in_bounds")
    o_ref[...] = packed[:, :w_out].astype(o_ref.dtype)


@functools.lru_cache(maxsize=None)
def _build_gather_call(rows, w_in, w_out, tb, vmem_limit, in_dtype, out_dtype, n_logical):
    in_it = jnp.dtype(in_dtype).itemsize
    out_it = jnp.dtype(out_dtype).itemsize
    cost = pl.CostEstimate(
        flops=int(n_logical) * (3 * D_IN + 2 * D_OUT),
        transcendentals=int(n_logical) * D_IN,
        bytes_accessed=int(n_logical) * (D_IN * in_it + D_OUT * out_it))
    kernel = functools.partial(_gate_kernel_gather, w_out=w_out)
    return pl.pallas_call(
        kernel,
        out_shape=jax.ShapeDtypeStruct((rows, w_out), out_dtype),
        grid=(pl.cdiv(rows, tb),),
        in_specs=[pl.BlockSpec((1, w_in), lambda i: (0, 0)),     # gate source map
                  pl.BlockSpec((1, w_in), lambda i: (0, 0)),     # per-column scales
                  pl.BlockSpec((1, w_in), lambda i: (0, 0)),     # output column map
                  pl.BlockSpec((tb, w_in), lambda i: (i, 0))],   # features
        out_specs=pl.BlockSpec((tb, w_out), lambda i: (i, 0)),
        compiler_params=pltpu.CompilerParams(
            dimension_semantics=("parallel",),
            vmem_limit_bytes=vmem_limit),
        cost_estimate=cost,
    )


def _forward_gather(features, c_scalar, c_gate, *, tn, out_dtype):
    n = features.shape[0]
    in_dtype = jnp.dtype(features.dtype)
    out_dtype = in_dtype if out_dtype is None else jnp.dtype(out_dtype)
    # Lane-density packing: two logical rows per VMEM row when N is even
    # (48->96 in, 40->80 out).  Row-major reshape on contiguous HBM arrays is free.
    r = 2 if (n % 2 == 0 and n >= 2) else 1
    rows, w_in, w_out = n // r, D_IN * r, D_OUT * r
    xp = features.reshape(rows, w_in)
    gsrc, scale, osrc = _packed_constants(r, float(c_scalar), float(c_gate))
    tb, vmem_limit = _pick_block_rows(rows, max(1, int(tn) // r),
                                      in_dtype.itemsize, out_dtype.itemsize)
    call = _build_gather_call(rows, w_in, w_out, tb, vmem_limit,
                              in_dtype, out_dtype, n)
    out = call(gsrc, scale, osrc, xp)
    return out.reshape(n, D_OUT)


# ---------------- fallback kernel: proven MXU-dot path (split-precision, exact) ------
def _gate_kernel_dot(emat_ref, x_ref, o_ref, *, c_scalar, c_gate):
    x = x_ref[...].astype(jnp.float32)
    s = jax.nn.silu(x[:, :SCALARS_DIM]) * c_scalar
    g = jax.nn.sigmoid(x[:, SCALARS_DIM:SCALARS_DIM + GATES_DIM]) * c_gate
    gt = x[:, SCALARS_DIM + GATES_DIM:]
    emat = emat_ref[...]
    # Split-precision dot: exact to ~2^-17 even if the MXU path rounds to bf16.
    g_hi = g.astype(jnp.bfloat16).astype(jnp.float32)
    g_lo = g - g_hi
    ge = (jnp.dot(g_hi, emat, preferred_element_type=jnp.float32) +
          jnp.dot(g_lo, emat, preferred_element_type=jnp.float32))
    o_ref[...] = jnp.concatenate([s, gt * ge], axis=-1).astype(o_ref.dtype)


@functools.lru_cache(maxsize=None)
def _build_dot_call(n, tb, vmem_limit, in_dtype, out_dtype, c_scalar, c_gate):
    in_it = jnp.dtype(in_dtype).itemsize
    out_it = jnp.dtype(out_dtype).itemsize
    cost = pl.CostEstimate(
        flops=int(n) * (4 * GATES_DIM * GATED_DIM + 6 * (SCALARS_DIM + GATES_DIM)
                        + GATED_DIM),
        transcendentals=int(n) * (SCALARS_DIM + GATES_DIM),
        bytes_accessed=int(n) * (D_IN * in_it + D_OUT * out_it))
    kernel = functools.partial(_gate_kernel_dot, c_scalar=c_scalar, c_gate=c_gate)
    return pl.pallas_call(
        kernel,
        out_shape=jax.ShapeDtypeStruct((n, D_OUT), out_dtype),
        grid=(pl.cdiv(n, tb),),
        in_specs=[pl.BlockSpec((NUM_GATED, GATED_DIM), lambda i: (0, 0)),
                  pl.BlockSpec((tb, D_IN), lambda i: (i, 0))],
        out_specs=pl.BlockSpec((tb, D_OUT), lambda i: (i, 0)),
        compiler_params=pltpu.CompilerParams(
            dimension_semantics=("parallel",),
            vmem_limit_bytes=vmem_limit),
        cost_estimate=cost,
    )


def _forward_dot(features, c_scalar, c_gate, *, tn, out_dtype):
    n = features.shape[0]
    in_dtype = jnp.dtype(features.dtype)
    out_dtype = in_dtype if out_dtype is None else jnp.dtype(out_dtype)
    tb, vmem_limit = _pick_block_rows(n, int(tn), in_dtype.itemsize, out_dtype.itemsize)
    call = _build_dot_call(n, tb, vmem_limit, in_dtype, out_dtype,
                           float(c_scalar), float(c_gate))
    return call(jnp.asarray(_gate_expand_matrix_np()), features)


# ---------------- public entry point ----------------
_GATHER_OK = {"value": None}  # resolved on first call


def gate_forward(features, c_scalar, c_gate, *, tn=8192, out_dtype=None, impl="auto"):
    """features: (N, D_IN) -> (N, D_OUT).  Handles arbitrary (ragged) N.

    impl: "auto" (gather kernel, MXU-dot fallback if it does not lower),
          "gather", or "dot".
    """
    n, d_in = features.shape
    assert d_in == D_IN, f"expected feature dim {D_IN}, got {d_in}"
    if impl == "dot":
        return _forward_dot(features, c_scalar, c_gate, tn=tn, out_dtype=out_dtype)
    if impl not in ("auto", "gather"):
        raise ValueError(f"unknown impl {impl!r}")
    if impl == "auto" and _GATHER_OK["value"] is False:
        return _forward_dot(features, c_scalar, c_gate, tn=tn, out_dtype=out_dtype)
    try:
        first = _GATHER_OK["value"] is None
        out = _forward_gather(features, c_scalar, c_gate, tn=tn, out_dtype=out_dtype)
        if first:
            jax.block_until_ready(out)   # surface lowering/runtime problems now
        _GATHER_OK["value"] = True
        return out
    except Exception:
        if impl == "gather":
            raise
        _GATHER_OK["value"] = False
        # TODO(synk): drop fallback once Pallas-TPU gather lowering is guaranteed.
        return _forward_dot(features, c_scalar, c_gate, tn=tn, out_dtype=out_dtype)


# ---------------- pure-JAX reference (matmul-free, exact) ----------------
def gate_reference(features, c_scalar, c_gate):
    s = jax.nn.silu(features[:, :SCALARS_DIM]) * c_scalar
    g = jax.nn.sigmoid(features[:, SCALARS_DIM:SCALARS_DIM + GATES_DIM]) * c_gate
    gt = features[:, SCALARS_DIM + GATES_DIM:]
    pieces, col = [], 0
    for i, d in enumerate(_gated_dims()):
        pieces.append(gt[:, col:col + d] * g[:, i:i + 1])
        col += d
    return jnp.concatenate([s] + pieces, axis=-1)


if __name__ == "__main__":
    key = jax.random.PRNGKey(0)
    k1, k2 = jax.random.split(key)

    c_scalar = _normalize2mom_const(_np_silu)      # ~1.679
    c_gate = _normalize2mom_const(_np_sigmoid)     # ~1.848

    # --- even N -> packed (2 logical rows per VMEM row) lane-dense path ---
    N = 256
    x = jax.random.normal(k1, (N, D_IN), dtype=jnp.float32)
    out = jax.block_until_ready(gate_forward(x, c_scalar, c_gate))
    ref = gate_reference(x, c_scalar, c_gate)
    assert out.shape == (N, D_OUT)
    np.testing.assert_allclose(np.asarray(out), np.asarray(ref), rtol=2e-5, atol=2e-5)

    # --- ragged / odd N -> unpacked path, boundary-masked tail, >=2 grid steps ---
    N2 = 203
    x2 = jax.random.normal(k2, (N2, D_IN), dtype=jnp.float32)
    out2 = jax.block_until_ready(gate_forward(x2, c_scalar, c_gate, tn=64))
    ref2 = gate_reference(x2, c_scalar, c_gate)
    assert out2.shape == (N2, D_OUT)
    np.testing.assert_allclose(np.asarray(out2), np.asarray(ref2), rtol=2e-5, atol=2e-5)

    # --- bf16 HBM writeback (compute stays f32 in VMEM): halves write bytes ---
    out_bf16 = jax.block_until_ready(
        gate_forward(x2, c_scalar, c_gate, tn=64, out_dtype=jnp.bfloat16))
    np.testing.assert_allclose(np.asarray(out_bf16, dtype=np.float32),
                               np.asarray(ref2), rtol=2e-2, atol=2e-2)

    # --- MXU-dot fallback path (split-precision) also exercised explicitly ---
    out_dot = jax.block_until_ready(gate_forward(x, c_scalar, c_gate, impl="dot"))
    np.testing.assert_allclose(np.asarray(out_dot), np.asarray(ref), rtol=1e-4, atol=1e-4)

    print("KERNEL_OK")
</pallas_src>

<mosaic_0001>
module attributes {stable_mosaic.version = 11 : i64} {
  func.func @_gate_kernel_gather(%arg0: i32, %arg1: memref<1x96xi32, #tpu.memory_space<vmem>>, %arg2: memref<1x96xf32, #tpu.memory_space<vmem>>, %arg3: memref<1x96xi32, #tpu.memory_space<vmem>>, %arg4: memref<64x96xf32, #tpu.memory_space<vmem>>, %arg5: memref<64x80xf32, #tpu.memory_space<vmem>>) attributes {dimension_semantics = [#tpu.dimension_semantics<parallel>], iteration_bounds = array<i64: 2>, scalar_prefetch = 0 : i64, scratch_operands = 0 : i64, tpu.core_type = #tpu.core_type<tc>, window_params = [{pipeline_mode = #tpu.pipeline_mode<synchronous>, transform_indices = @transform_0, window_bounds = array<i64: 1, 96>}, {pipeline_mode = #tpu.pipeline_mode<synchronous>, transform_indices = @transform_1, window_bounds = array<i64: 1, 96>}, {pipeline_mode = #tpu.pipeline_mode<synchronous>, transform_indices = @transform_2, window_bounds = array<i64: 1, 96>}, {transform_indices = @transform_3, window_bounds = array<i64: 64, 96>}, {transform_indices = @transform_4, window_bounds = array<i64: 64, 80>}]} {
    %c0 = arith.constant 0 : index
    %c0_0 = arith.constant 0 : index
    %0 = vector.load %arg4[%c0, %c0_0] : memref<64x96xf32, #tpu.memory_space<vmem>>, vector<64x96xf32>
    %1 = arith.negf %0 : vector<64x96xf32>
    %2 = math.exp %1 : vector<64x96xf32>
    %cst = arith.constant 1.000000e+00 : f32
    %3 = vector.broadcast %cst : f32 to vector<64x96xf32>
    %4 = arith.addf %3, %2 : vector<64x96xf32>
    %5 = arith.divf %3, %4 : vector<64x96xf32>
    %c0_1 = arith.constant 0 : index
    %c0_2 = arith.constant 0 : index
    %6 = vector.load %arg1[%c0_1, %c0_2] : memref<1x96xi32, #tpu.memory_space<vmem>>, vector<1x96xi32>
    %7 = vector.shape_cast %6 : vector<1x96xi32> to vector<1x96xi32>
    %8 = vector.broadcast %7 : vector<1x96xi32> to vector<64x96xi32>
    %9 = vector.shape_cast %8 : vector<64x96xi32> to vector<64x96x1xi32>
    %10 = vector.shape_cast %9 : vector<64x96x1xi32> to vector<64x96xi32>
    %11 = tpu.dynamic_gather %5[%10] in [1] : vector<64x96xf32>, vector<64x96xi32> -> vector<64x96xf32>
    %12 = arith.mulf %0, %11 : vector<64x96xf32>
    %c0_3 = arith.constant 0 : index
    %c0_4 = arith.constant 0 : index
    %13 = vector.load %arg2[%c0_3, %c0_4] : memref<1x96xf32, #tpu.memory_space<vmem>>, vector<1x96xf32>
    %14 = vector.broadcast %13 : vector<1x96xf32> to vector<64x96xf32>
    %15 = arith.mulf %12, %14 : vector<64x96xf32>
    %c0_5 = arith.constant 0 : index
    %c0_6 = arith.constant 0 : index
    %16 = vector.load %arg3[%c0_5, %c0_6] : memref<1x96xi32, #tpu.memory_space<vmem>>, vector<1x96xi32>
    %17 = vector.shape_cast %16 : vector<1x96xi32> to vector<1x96xi32>
    %18 = vector.broadcast %17 : vector<1x96xi32> to vector<64x96xi32>
    %19 = vector.shape_cast %18 : vector<64x96xi32> to vector<64x96x1xi32>
    %20 = vector.shape_cast %19 : vector<64x96x1xi32> to vector<64x96xi32>
    %21 = tpu.dynamic_gather %15[%20] in [1] : vector<64x96xf32>, vector<64x96xi32> -> vector<64x96xf32>
    %22 = vector.extract_strided_slice %21 {offsets = [0, 0], sizes = [64, 80], strides = [1, 1]} : vector<64x96xf32> to vector<64x80xf32>
    %c0_7 = arith.constant 0 : index
    %c0_8 = arith.constant 0 : index
    %23 = vector.load %arg5[%c0_7, %c0_8] : memref<64x80xf32, #tpu.memory_space<vmem>>, vector<64x80xf32>
    tpu.vector_store %arg5[%c0_7, %c0_8], %22 {strides = array<i32>} : memref<64x80xf32, #tpu.memory_space<vmem>>, vector<64x80xf32>,
    return
  }
  func.func @transform_0(%arg0: i32) -> (i32, i32) {
    %c0_i32 = arith.constant 0 : i32
    %c0_i32_0 = arith.constant 0 : i32
    %c0_i32_1 = arith.constant 0 : i32
    return %c0_i32, %c0_i32_0 : i32, i32
  }
  func.func @transform_1(%arg0: i32) -> (i32, i32) {
    %c0_i32 = arith.constant 0 : i32
    %c0_i32_0 = arith.constant 0 : i32
    %c0_i32_1 = arith.constant 0 : i32
    return %c0_i32, %c0_i32_0 : i32, i32
  }
  func.func @transform_2(%arg0: i32) -> (i32, i32) {
    %c0_i32 = arith.constant 0 : i32
    %c0_i32_0 = arith.constant 0 : i32
    %c0_i32_1 = arith.constant 0 : i32
    return %c0_i32, %c0_i32_0 : i32, i32
  }
  func.func @transform_3(%arg0: i32) -> (i32, i32) {
    %c0_i32 = arith.constant 0 : i32
    %c0_i32_0 = arith.constant 0 : i32
    return %arg0, %c0_i32 : i32, i32
  }
  func.func @transform_4(%arg0: i32) -> (i32, i32) {
    %c0_i32 = arith.constant 0 : i32
    %c0_i32_0 = arith.constant 0 : i32
    return %arg0, %c0_i32 : i32, i32
  }
}

module attributes {stable_mosaic.version = 11 : i64} {
  func.func @_gate_kernel_dot(%arg0: i32, %arg1: memref<8x32xf32, #tpu.memory_space<vmem>>, %arg2: memref<128x48xf32, #tpu.memory_space<vmem>>, %arg3: memref<128x40xf32, #tpu.memory_space<vmem>>) attributes {dimension_semantics = [#tpu.dimension_semantics<parallel>], iteration_bounds = array<i64: 2>, scalar_prefetch = 0 : i64, scratch_operands = 0 : i64, tpu.core_type = #tpu.core_type<tc>, window_params = [{pipeline_mode = #tpu.pipeline_mode<synchronous>, transform_indices = @transform_0, window_bounds = array<i64: 8, 32>}, {transform_indices = @transform_1, window_bounds = array<i64: 128, 48>}, {transform_indices = @transform_2, window_bounds = array<i64: 128, 40>}]} {
    %c0 = arith.constant 0 : index
    %c0_0 = arith.constant 0 : index
    %0 = vector.load %arg2[%c0, %c0_0] : memref<128x48xf32, #tpu.memory_space<vmem>>, vector<128x48xf32>
    %1 = vector.extract_strided_slice %0 {offsets = [0, 0], sizes = [128, 8], strides = [1, 1]} : vector<128x48xf32> to vector<128x8xf32>
    %2 = arith.negf %1 : vector<128x8xf32>
    %3 = math.exp %2 : vector<128x8xf32>
    %cst = arith.constant 1.000000e+00 : f32
    %4 = vector.broadcast %cst : f32 to vector<128x8xf32>
    %5 = arith.addf %4, %3 : vector<128x8xf32>
    %6 = arith.divf %4, %5 : vector<128x8xf32>
    %7 = arith.mulf %1, %6 : vector<128x8xf32>
    %cst_1 = arith.constant 1.67653251 : f32
    %8 = vector.broadcast %cst_1 : f32 to vector<128x8xf32>
    %9 = arith.mulf %7, %8 : vector<128x8xf32>
    %10 = vector.extract_strided_slice %0 {offsets = [0, 8], sizes = [128, 8], strides = [1, 1]} : vector<128x48xf32> to vector<128x8xf32>
    %11 = arith.negf %10 : vector<128x8xf32>
    %12 = math.exp %11 : vector<128x8xf32>
    %cst_2 = arith.constant 1.000000e+00 : f32
    %13 = vector.broadcast %cst_2 : f32 to vector<128x8xf32>
    %14 = arith.addf %13, %12 : vector<128x8xf32>
    %15 = arith.divf %13, %14 : vector<128x8xf32>
    %cst_3 = arith.constant 1.8462286 : f32
    %16 = vector.broadcast %cst_3 : f32 to vector<128x8xf32>
    %17 = arith.mulf %15, %16 : vector<128x8xf32>
    %18 = vector.extract_strided_slice %0 {offsets = [0, 16], sizes = [128, 32], strides = [1, 1]} : vector<128x48xf32> to vector<128x32xf32>
    %c0_4 = arith.constant 0 : index
    %c0_5 = arith.constant 0 : index
    %19 = vector.load %arg1[%c0_4, %c0_5] : memref<8x32xf32, #tpu.memory_space<vmem>>, vector<8x32xf32>
    %20 = arith.truncf %17 : vector<128x8xf32> to vector<128x8xbf16>
    %21 = arith.extf %20 : vector<128x8xbf16> to vector<128x8xf32>
    %22 = arith.subf %17, %21 : vector<128x8xf32>
    %cst_6 = arith.constant dense<0.000000e+00> : vector<128x32xf32>
    %23 = tpu.matmul %21, %19, %cst_6 {dimension_numbers = #tpu.dot_dimension_numbers<[1], [0], [0], [1], [0, 0, 1, 1], [], []>} : vector<128x8xf32>, vector<8x32xf32>, vector<128x32xf32> -> vector<128x32xf32>
    %cst_7 = arith.constant dense<0.000000e+00> : vector<128x32xf32>
    %24 = tpu.matmul %22, %19, %cst_7 {dimension_numbers = #tpu.dot_dimension_numbers<[1], [0], [0], [1], [0, 0, 1, 1], [], []>} : vector<128x8xf32>, vector<8x32xf32>, vector<128x32xf32> -> vector<128x32xf32>
    %25 = arith.addf %23, %24 : vector<128x32xf32>
    %26 = arith.mulf %18, %25 : vector<128x32xf32>
    %27 = tpu.concatenate %9, %26 in 1 : vector<128x8xf32>, vector<128x32xf32> -> vector<128x40xf32>
    %c0_8 = arith.constant 0 : index
    %c0_9 = arith.constant 0 : index
    %28 = vector.load %arg3[%c0_8, %c0_9] : memref<128x40xf32, #tpu.memory_space<vmem>>, vector<128x40xf32>
    tpu.vector_store %arg3[%c0_8, %c0_9], %27 {strides = array<i32>} : memref<128x40xf32, #tpu.memory_space<vmem>>, vector<128x40xf32>,
    return
  }
  func.func @transform_0(%arg0: i32) -> (i32, i32) {
    %c0_i32 = arith.constant 0 : i32
    %c0_i32_0 = arith.constant 0 : i32
    %c0_i32_1 = arith.constant 0 : i32
    return %c0_i32, %c0_i32_0 : i32, i32
  }
  func.func @transform_1(%arg0: i32) -> (i32, i32) {
    %c0_i32 = arith.constant 0 : i32
    %c0_i32_0 = arith.constant 0 : i32
    return %arg0, %c0_i32 : i32, i32
  }
  func.func @transform_2(%arg0: i32) -> (i32, i32) {
    %c0_i32 = arith.constant 0 : i32
    %c0_i32_0 = arith.constant 0 : i32
    return %arg0, %c0_i32 : i32, i32
  }
}

</mosaic_0001>

<llo_original>
// kernel: tpu_custom_call.1
$region0: #{tpu_custom_call.1}
  #allocation0 [shape = 'u32[]', space=smem, size = 0x4, offset = 0x4, fixed_abs, tag = 'smem constant byte address 0x4 - core index']
  #allocation1 [shape = 'u32[144,128]{1,0:T(1,128)}', space=vmem, size = 0x12000, scoped, tag = 'internal scratch']
  %s0 = inlined_call_operand.vmem [shape: s32[1,96], index: 0, kind: input, shape index: {}]
  %s1 = inlined_call_operand.vmem [shape: f32[1,96], index: 1, kind: input, shape index: {}]
  %s2 = inlined_call_operand.vmem [shape: s32[1,96], index: 2, kind: input, shape index: {}]
  %s3 = inlined_call_operand.vmem [shape: f32[128,96], index: 3, kind: input, shape index: {}]
  %s4 = inlined_call_operand.vmem [shape: f32[128,80], index: 4, kind: output, shape index: {}]
  %s5 = sld [smem:[#allocation0]]
  $region49: #{tpu_custom_call.1} parent=0
    _
  %s7 = ssub.s32 1, %s5
  %s8 = scalar_select 0, %s7, %s5
  loop: start=0, step=1, limit=4
  $region2: #{tpu_custom_call.1} parent=0 // loop_pre_header
    _
  $region3: #{tpu_custom_call.1} parent=0 // loop_header
    %s10 = sphi 0, %s14
    %p11 = scmp.ge.s32.totalorder %s10, 4
    %s18 = sphi 0, %s18
    %s20 = sphi 0, %s18
    %s21 = sphi 0, %s20
    %s35 = sphi 0, %s21
    %s39 = sphi 0, %s39
    %s41 = sphi 0, %s39
    %s42 = sphi 0, %s41
    %s56 = sphi 0, %s42
    %s60 = sphi 0, %s60
    %s62 = sphi 0, %s60
    %s63 = sphi 0, %s62
    %s77 = sphi 0, %s63
    %s83 = sphi 0, %s85
    %s86 = sphi 0, %s83
    %s87 = sphi 0, %s86
    %s103 = sphi 0, %s87
    %s109 = sphi 0, %s111
    %s112 = sphi 0, %s109
    %s113 = sphi 0, %s112
    %s129 = sphi 0, %s113
  $region4: #{tpu_custom_call.1} parent=0 // loop_header_branch
    %13 = sbr.rel (%p11) target = $region8
  $region5: #{tpu_custom_call.1} parent=0 // loop_body
    %s15 = ssub.s32 %s10, 1
    %s16 = ssub.s32 %s10, 2
    %s17 = sadd.s32 %s10, 1
    %s19 = sadd.s32 %s18, 1
    %p22 = scmp.eq.s32.totalorder %s10, 1
    %p23 = scmp.ne.s32.totalorder %s18, %s20
    %p24 = scmp.eq.s32.totalorder %s10, 0
    %p25 = por %p23, %p24
    %p26 = scmp.ne.s32.totalorder %s18, %s20
    %p27 = scmp.eq.s32.totalorder %s15, 1
    %p28 = por %p26, %p27
    %p29 = scmp.ne.s32.totalorder %s20, %s21
    %p30 = scmp.eq.s32.totalorder %s15, 0
    %p31 = por %p29, %p30
    %p32 = scmp.ne.s32.totalorder %s20, %s21
    %p33 = scmp.eq.s32.totalorder %s16, 1
    %p34 = por %p32, %p33
    %p36 = scmp.ne.s32.totalorder %s21, %s35
    %p37 = scmp.eq.s32.totalorder %s16, 0
    %p38 = por %p36, %p37
    %s40 = sadd.s32 %s39, 1
    %p43 = scmp.eq.s32.totalorder %s10, 1
    %p44 = scmp.ne.s32.totalorder %s39, %s41
    %p45 = scmp.eq.s32.totalorder %s10, 0
    %p46 = por %p44, %p45
    %p47 = scmp.ne.s32.totalorder %s39, %s41
    %p48 = scmp.eq.s32.totalorder %s15, 1
    %p49 = por %p47, %p48
    %p50 = scmp.ne.s32.totalorder %s41, %s42
    %p51 = scmp.eq.s32.totalorder %s15, 0
    %p52 = por %p50, %p51
    %p53 = scmp.ne.s32.totalorder %s41, %s42
    %p54 = scmp.eq.s32.totalorder %s16, 1
    %p55 = por %p53, %p54
    %p57 = scmp.ne.s32.totalorder %s42, %s56
    %p58 = scmp.eq.s32.totalorder %s16, 0
    %p59 = por %p57, %p58
    %s61 = sadd.s32 %s60, 1
    %p64 = scmp.eq.s32.totalorder %s10, 1
    %p65 = scmp.ne.s32.totalorder %s60, %s62
    %p66 = scmp.eq.s32.totalorder %s10, 0
    %p67 = por %p65, %p66
    %p68 = scmp.ne.s32.totalorder %s60, %s62
    %p69 = scmp.eq.s32.totalorder %s15, 1
    %p70 = por %p68, %p69
    %p71 = scmp.ne.s32.totalorder %s62, %s63
    %p72 = scmp.eq.s32.totalorder %s15, 0
    %p73 = por %p71, %p72
    %p74 = scmp.ne.s32.totalorder %s62, %s63
    %p75 = scmp.eq.s32.totalorder %s16, 1
    %p76 = por %p74, %p75
    %p78 = scmp.ne.s32.totalorder %s63, %s77
    %p79 = scmp.eq.s32.totalorder %s16, 0
    %p80 = por %p78, %p79
    %s81 = ssub.s32 %s10, %s17
    %p82 = scmp.eq.s32.totalorder %s81, 0
    %s84 = sadd.s32 %s83, 1
    %s85 = scalar_select %p82, %s83, %s84
    %p88 = pneg %p82
    %p89 = scmp.eq.s32.totalorder %s10, 1
    %p90 = por %p88, %p89
    %p91 = scmp.ne.s32.totalorder %s83, %s86
    %p92 = scmp.eq.s32.totalorder %s10, 0
    %p93 = por %p91, %p92
    %p94 = scmp.ne.s32.totalorder %s83, %s86
    %p95 = scmp.eq.s32.totalorder %s15, 1
    %p96 = por %p94, %p95
    %p97 = scmp.ne.s32.totalorder %s86, %s87
    %p98 = scmp.eq.s32.totalorder %s15, 0
    %p99 = por %p97, %p98
    %p100 = scmp.ne.s32.totalorder %s86, %s87
    %p101 = scmp.eq.s32.totalorder %s16, 1
    %p102 = por %p100, %p101
    %p104 = scmp.ne.s32.totalorder %s87, %s103
    %p105 = scmp.eq.s32.totalorder %s16, 0
    %p106 = por %p104, %p105
    %s107 = ssub.s32 %s10, %s17
    %p108 = scmp.eq.s32.totalorder %s107, 0
    %s110 = sadd.s32 %s109, 1
    %s111 = scalar_select %p108, %s109, %s110
    %p114 = pneg %p108
    %p115 = scmp.eq.s32.totalorder %s10, 1
    %p116 = por %p114, %p115
    %p117 = scmp.ne.s32.totalorder %s109, %s112
    %p118 = scmp.eq.s32.totalorder %s10, 0
    %p119 = por %p117, %p118
    %p120 = scmp.ne.s32.totalorder %s109, %s112
    %p121 = scmp.eq.s32.totalorder %s15, 1
    %p122 = por %p120, %p121
    %p123 = scmp.ne.s32.totalorder %s112, %s113
    %p124 = scmp.eq.s32.totalorder %s15, 0
    %p125 = por %p123, %p124
    %p126 = scmp.ne.s32.totalorder %s112, %s113
    %p127 = scmp.eq.s32.totalorder %s16, 1
    %p128 = por %p126, %p127
    %p130 = scmp.ne.s32.totalorder %s113, %s129
    %p131 = scmp.eq.s32.totalorder %s16, 0
    %p132 = por %p130, %p131
    %p133 = scmp.le.s32.totalorder 1, %s10
    %p134 = scmp.lt.s32.totalorder %s10, 3
    %p135 = pnand %p133, %p134
    %p136 = pneg %p135
    // Predicated region
    $region9: #{tpu_custom_call.1} parent=5 // pred_check
      _
    $region10: #{tpu_custom_call.1} parent=5 // pred_check_branch
      %138 = sbr.rel (%p135) target = $region12
    $region11: #{tpu_custom_call.1} parent=5 // pred_region
      %s139 = ssub.s32 %s10, 1
      // Predicated region
      $region13: #{tpu_custom_call.1} parent=11 // pred_check
        %p140 = pneg %p31
      $region14: #{tpu_custom_call.1} parent=11 // pred_check_branch
        %142 = sbr.rel (%p140) target = $region16
      $region15: #{tpu_custom_call.1} parent=11 // pred_region
        _
      $region16: #{tpu_custom_call.1} parent=11 // pred_fallthru
        _
      // Predicated region
      $region17: #{tpu_custom_call.1} parent=11 // pred_check
        %p143 = pneg %p52
      $region18: #{tpu_custom_call.1} parent=11 // pred_check_branch
        %145 = sbr.rel (%p143) target = $region20
      $region19: #{tpu_custom_call.1} parent=11 // pred_region
        _
      $region20: #{tpu_custom_call.1} parent=11 // pred_fallthru
        _
      // Predicated region
      $region21: #{tpu_custom_call.1} parent=11 // pred_check
        %p146 = pneg %p73
      $region22: #{tpu_custom_call.1} parent=11 // pred_check_branch
        %148 = sbr.rel (%p146) target = $region24
      $region23: #{tpu_custom_call.1} parent=11 // pred_region
        _
      $region24: #{tpu_custom_call.1} parent=11 // pred_fallthru
        _
    $region12: #{tpu_custom_call.1} parent=5 // pred_fallthru
      _
    %p149 = scmp.lt.s32.totalorder %s10, 2
    // Predicated region
    $region25: #{tpu_custom_call.1} parent=5 // pred_check
      %p150 = pneg %p149
    $region26: #{tpu_custom_call.1} parent=5 // pred_check_branch
      %152 = sbr.rel (%p150) target = $region28
    $region27: #{tpu_custom_call.1} parent=5 // pred_region
      // Predicated region
      $region29: #{tpu_custom_call.1} parent=27 // pred_check
        %p153 = pneg %p93
      $region30: #{tpu_custom_call.1} parent=27 // pred_check_branch
        %155 = sbr.rel (%p153) target = $region32
      $region31: #{tpu_custom_call.1} parent=27 // pred_region
        %s156 = smul.u32 8, %s10
        %p157 = scmp.lt.s32.totalorder %s156, 15
        %s158 = scalar_select %p157, %s156, 15
        %s159 = smul.addr %s158, 8
        %s160 = scalar_lea.vmem %s3, %s159
        %s161 = smul.u32 8, %s10
      $region32: #{tpu_custom_call.1} parent=27 // pred_fallthru
        _
    $region28: #{tpu_custom_call.1} parent=5 // pred_fallthru
      _
    %p162 = scmp.le.s32.totalorder 1, %s10
    %p163 = scmp.lt.s32.totalorder %s10, 3
    %p164 = pnand %p162, %p163
    %p165 = pneg %p164
    // Predicated region
    $region33: #{tpu_custom_call.1} parent=5 // pred_check
      _
    $region34: #{tpu_custom_call.1} parent=5 // pred_check_branch
      %167 = sbr.rel (%p164) target = $region36
    $region35: #{tpu_custom_call.1} parent=5 // pred_region
      %s168 = ssub.s32 %s10, 1
      %p169 = pneg %p31
      %p170 = pneg %p28
      %p171 = pneg %p52
      %p172 = pneg %p49
      %p173 = pneg %p73
      %p174 = pneg %p70
      %s175 = smul.u32 8, %s15
      %p176 = scmp.lt.s32.totalorder %s175, 15
      %s177 = scalar_select %p176, %s175, 15
      %s178 = smul.addr %s177, 8
      %s179 = scalar_lea.vmem %s3, %s178
      %p180 = pneg %p99
      %p181 = pneg %p96
      %p182 = pneg %p125
      %p183 = pneg %p122
      %s184 = smul.u32 8, %s15
      %p185 = scmp.lt.s32.totalorder %s184, 15
      %s186 = scalar_select %p185, %s184, 15
      %s187 = smul.addr %s186, 8
      %s188 = scalar_lea.vmem %s4, %s187
      %s189 = smul.u32 8, %s15
      %p190 = scmp.lt.s32.totalorder %s189, 15
      %s191 = scalar_select %p190, %s189, 15
      %s192 = smul.addr %s191, 8
      %s193 = scalar_lea.vmem %s3, %s192
      %s194 = smul.u32 8, %s15
      %s195 = smul.u32 8, %s15
      %p196 = scmp.lt.s32.totalorder %s195, 15
      %s197 = scalar_select %p196, %s195, 15
      %s198 = smul.addr %s197, 8
      %s199 = scalar_lea.vmem %s4, %s198
      %s200 = smul.u32 8, %s15
      %v201 = vld [vmem:[%s193] sm:$0xff]
      %v202 = vld [vmem:[%s193 + $0x8] sm:$0xff]
      %v203 = vld [vmem:[%s193 + $0x10] sm:$0xff]
      %v204 = vld [vmem:[%s193 + $0x18] sm:$0xff]
      %v205 = vld [vmem:[%s193 + $0x20] sm:$0xff]
      %v206 = vld [vmem:[%s193 + $0x28] sm:$0xff]
      %v207 = vld [vmem:[%s193 + $0x30] sm:$0xff]
      %v208 = vld [vmem:[%s193 + $0x38] sm:$0xff]
      %v209 = vxor.u32 %v201, 2147483648
      %v210 = vxor.u32 %v202, 2147483648
      %v211 = vxor.u32 %v203, 2147483648
      %v212 = vxor.u32 %v204, 2147483648
      %v213 = vxor.u32 %v205, 2147483648
      %v214 = vxor.u32 %v206, 2147483648
      %v215 = vxor.u32 %v207, 2147483648
      %v216 = vxor.u32 %v208, 2147483648
      %v217 = vmul.f32 %v209, 1.442695
      %v218 = vpow.pop %v217
      %v219 = vmul.f32 %v210, 1.442695
      %v220 = vpow.pop %v219
      %v221 = vmul.f32 %v211, 1.442695
      %v222 = vpow.pop %v221
      %v223 = vmul.f32 %v212, 1.442695
      %v224 = vpow.pop %v223
      %v225 = vmul.f32 %v213, 1.442695
      %v226 = vpow.pop %v225
      %v227 = vmul.f32 %v214, 1.442695
      %v228 = vpow.pop %v227
      %v229 = vmul.f32 %v215, 1.442695
      %v230 = vpow.pop %v229
      %v231 = vmul.f32 %v216, 1.442695
      %v232 = vpow.pop %v231
      %v233 = vadd.f32 %v218, 1.0
      %v234 = vadd.f32 %v220, 1.0
      %v235 = vadd.f32 %v222, 1.0
      %v236 = vadd.f32 %v224, 1.0
      %v237 = vadd.f32 %v226, 1.0
      %v238 = vadd.f32 %v228, 1.0
      %v239 = vadd.f32 %v230, 1.0
      %v240 = vadd.f32 %v232, 1.0
      %v241 = vrcp.pop %v233
      %v242 = vmul.f32 1.0, %v241
      %v243 = vrcp.pop %v234
      %v244 = vmul.f32 1.0, %v243
      %v245 = vrcp.pop %v235
      %v246 = vmul.f32 1.0, %v245
      %v247 = vrcp.pop %v236
      %v248 = vmul.f32 1.0, %v247
      %v249 = vrcp.pop %v237
      %v250 = vmul.f32 1.0, %v249
      %v251 = vrcp.pop %v238
      %v252 = vmul.f32 1.0, %v251
      %v253 = vrcp.pop %v239
      %v254 = vmul.f32 1.0, %v253
      %v255 = vrcp.pop %v240
      %v256 = vmul.f32 1.0, %v255
      %v257 = vld [vmem:[%s0] sm:$0x1]
      %v258 = vlaneseq
      %v259 = vshrl.u32 %v258, 7
      %v260 = vsub.s32 0, %v259
      %v261 = vrot.slane %v257, %v260
      %262 = vset.pattern.permute.xlu0 %v261
      %263 = vperm.xlu0 %262, %v242
      %v264 = vpop.permute.xlu0 %263
      %265 = vset.pattern.permute.xlu0 %v261
      %266 = vperm.xlu0 %265, %v244
      %v267 = vpop.permute.xlu0 %266
      %268 = vset.pattern.permute.xlu0 %v261
      %269 = vperm.xlu0 %268, %v246
      %v270 = vpop.permute.xlu0 %269
      %271 = vset.pattern.permute.xlu0 %v261
      %272 = vperm.xlu0 %271, %v248
      %v273 = vpop.permute.xlu0 %272
      %274 = vset.pattern.permute.xlu0 %v261
      %275 = vperm.xlu0 %274, %v250
      %v276 = vpop.permute.xlu0 %275
      %277 = vset.pattern.permute.xlu0 %v261
      %278 = vperm.xlu0 %277, %v252
      %v279 = vpop.permute.xlu0 %278
      %280 = vset.pattern.permute.xlu0 %v261
      %281 = vperm.xlu0 %280, %v254
      %v282 = vpop.permute.xlu0 %281
      %283 = vset.pattern.permute.xlu0 %v261
      %284 = vperm.xlu0 %283, %v256
      %v285 = vpop.permute.xlu0 %284
      %v286 = vmul.f32 %v201, %v264
      %v287 = vmul.f32 %v202, %v267
      %v288 = vmul.f32 %v203, %v270
      %v289 = vmul.f32 %v204, %v273
      %v290 = vmul.f32 %v205, %v276
      %v291 = vmul.f32 %v206, %v279
      %v292 = vmul.f32 %v207, %v282
      %v293 = vmul.f32 %v208, %v285
      %v294 = vld [vmem:[%s1] sm:$0x1]
      %v296 = vlaneseq
      %v297 = vshrl.u32 %v296, 7
      %v298 = vsub.s32 0, %v297
      %v299 = vrot.slane %v294, %v298
      %v301 = vmul.f32 %v286, %v299
      %v302 = vmul.f32 %v287, %v299
      %v303 = vmul.f32 %v288, %v299
      %v304 = vmul.f32 %v289, %v299
      %v305 = vmul.f32 %v290, %v299
      %v306 = vmul.f32 %v291, %v299
      %v307 = vmul.f32 %v292, %v299
      %v308 = vmul.f32 %v293, %v299
      %v309 = vld [vmem:[%s2] sm:$0x1]
      %v310 = vlaneseq
      %v311 = vshrl.u32 %v310, 7
      %v312 = vsub.s32 0, %v311
      %v313 = vrot.slane %v309, %v312
      %314 = vset.pattern.permute.xlu0 %v313
      %315 = vperm.xlu0 %314, %v301
      %v316 = vpop.permute.xlu0 %315
      %317 = vset.pattern.permute.xlu0 %v313
      %318 = vperm.xlu0 %317, %v302
      %v319 = vpop.permute.xlu0 %318
      %320 = vset.pattern.permute.xlu0 %v313
      %321 = vperm.xlu0 %320, %v303
      %v322 = vpop.permute.xlu0 %321
      %323 = vset.pattern.permute.xlu0 %v313
      %324 = vperm.xlu0 %323, %v304
      %v325 = vpop.permute.xlu0 %324
      %326 = vset.pattern.permute.xlu0 %v313
      %327 = vperm.xlu0 %326, %v305
      %v328 = vpop.permute.xlu0 %327
      %329 = vset.pattern.permute.xlu0 %v313
      %330 = vperm.xlu0 %329, %v306
      %v331 = vpop.permute.xlu0 %330
      %332 = vset.pattern.permute.xlu0 %v313
      %333 = vperm.xlu0 %332, %v307
      %v334 = vpop.permute.xlu0 %333
      %335 = vset.pattern.permute.xlu0 %v313
      %336 = vperm.xlu0 %335, %v308
      %v337 = vpop.permute.xlu0 %336
      %vm338 = vcmask 654336
      %339 = vst.msk [vmem:[%s199] sm:$0xff] %vm338, %v316
      %340 = vst.msk [vmem:[%s199 + $0x8] sm:$0xff] %vm338, %v319
      %341 = vst.msk [vmem:[%s199 + $0x10] sm:$0xff] %vm338, %v322
      %342 = vst.msk [vmem:[%s199 + $0x18] sm:$0xff] %vm338, %v325
      %343 = vst.msk [vmem:[%s199 + $0x20] sm:$0xff] %vm338, %v328
      %344 = vst.msk [vmem:[%s199 + $0x28] sm:$0xff] %vm338, %v331
      %345 = vst.msk [vmem:[%s199 + $0x30] sm:$0xff] %vm338, %v334
      %346 = vst.msk [vmem:[%s199 + $0x38] sm:$0xff] %vm338, %v337
      %s347 = smul.u32 8, %s15
      %p348 = scmp.lt.s32.totalorder %s347, 15
      %s349 = scalar_select %p348, %s347, 15
      %s350 = smul.addr %s349, 8
      %s351 = scalar_lea.vmem %s4, %s350
      // Predicated region
      $region37: #{tpu_custom_call.1} parent=35 // pred_check
        %p352 = pneg %p122
      $region38: #{tpu_custom_call.1} parent=35 // pred_check_branch
        %354 = sbr.rel (%p352) target = $region40
      $region39: #{tpu_custom_call.1} parent=35 // pred_region
        %s355 = smul.u32 8, %s15
      $region40: #{tpu_custom_call.1} parent=35 // pred_fallthru
        _
    $region36: #{tpu_custom_call.1} parent=5 // pred_fallthru
      _
    %p356 = scmp.le.s32.totalorder 2, %s10
    // Predicated region
    $region41: #{tpu_custom_call.1} parent=5 // pred_check
      %p357 = pneg %p356
    $region42: #{tpu_custom_call.1} parent=5 // pred_check_branch
      %359 = sbr.rel (%p357) target = $region44
    $region43: #{tpu_custom_call.1} parent=5 // pred_region
      %s360 = ssub.s32 %s10, 2
      // Predicated region
      $region45: #{tpu_custom_call.1} parent=43 // pred_check
        %p361 = pneg %p128
      $region46: #{tpu_custom_call.1} parent=43 // pred_check_branch
        %363 = sbr.rel (%p361) target = $region48
      $region47: #{tpu_custom_call.1} parent=43 // pred_region
        %s364 = smul.u32 8, %s16
        %p365 = scmp.lt.s32.totalorder %s364, 15
        %s366 = scalar_select %p365, %s364, 15
        %s367 = smul.addr %s366, 8
        %s368 = scalar_lea.vmem %s4, %s367
      $region48: #{tpu_custom_call.1} parent=43 // pred_fallthru
        _
    $region44: #{tpu_custom_call.1} parent=5 // pred_fallthru
      _
  $region6: #{tpu_custom_call.1} parent=0 // loop_footer
    %s14 = sadd.s32 1, %s10
  $region7: #{tpu_custom_call.1} parent=0 // loop_footer_branch
    %9 = sbr.rel target = $region3
  $region8: #{tpu_custom_call.1} parent=0 // loop_exit
    _

// kernel: tpu_custom_call.1
$region0: #{tpu_custom_call.1}
  #allocation0 [shape = 'u32[]', space=smem, size = 0x4, offset = 0x4, fixed_abs, tag = 'smem constant byte address 0x4 - core index']
  #allocation1 [shape = 'u32[144,128]{1,0:T(1,128)}', space=vmem, size = 0x12000, scoped, tag = 'internal scratch']
  %s0 = inlined_call_operand.vmem [shape: f32[8,32], index: 0, kind: input, shape index: {}]
  %s1 = inlined_call_operand.vmem [shape: f32[256,48], index: 1, kind: input, shape index: {}]
  %s2 = inlined_call_operand.vmem [shape: f32[256,40], index: 2, kind: output, shape index: {}]
  %s3 = sld [smem:[#allocation0]]
  $region41: #{tpu_custom_call.1} parent=0
    _
  %s5 = ssub.s32 1, %s3
  %s6 = scalar_select 0, %s5, %s3
  loop: start=0, step=1, limit=4
  $region2: #{tpu_custom_call.1} parent=0 // loop_pre_header
    _
  $region3: #{tpu_custom_call.1} parent=0 // loop_header
    %s8 = sphi 0, %s12
    %p9 = scmp.ge.s32.totalorder %s8, 4
    %s16 = sphi 0, %s16
    %s18 = sphi 0, %s16
    %s19 = sphi 0, %s18
    %s33 = sphi 0, %s19
    %s39 = sphi 0, %s41
    %s42 = sphi 0, %s39
    %s43 = sphi 0, %s42
    %s59 = sphi 0, %s43
    %s65 = sphi 0, %s67
    %s68 = sphi 0, %s65
    %s69 = sphi 0, %s68
    %s85 = sphi 0, %s69
  $region4: #{tpu_custom_call.1} parent=0 // loop_header_branch
    %11 = sbr.rel (%p9) target = $region8
  $region5: #{tpu_custom_call.1} parent=0 // loop_body
    %s13 = ssub.s32 %s8, 1
    %s14 = ssub.s32 %s8, 2
    %s15 = sadd.s32 %s8, 1
    %s17 = sadd.s32 %s16, 1
    %p20 = scmp.eq.s32.totalorder %s8, 1
    %p21 = scmp.ne.s32.totalorder %s16, %s18
    %p22 = scmp.eq.s32.totalorder %s8, 0
    %p23 = por %p21, %p22
    %p24 = scmp.ne.s32.totalorder %s16, %s18
    %p25 = scmp.eq.s32.totalorder %s13, 1
    %p26 = por %p24, %p25
    %p27 = scmp.ne.s32.totalorder %s18, %s19
    %p28 = scmp.eq.s32.totalorder %s13, 0
    %p29 = por %p27, %p28
    %p30 = scmp.ne.s32.totalorder %s18, %s19
    %p31 = scmp.eq.s32.totalorder %s14, 1
    %p32 = por %p30, %p31
    %p34 = scmp.ne.s32.totalorder %s19, %s33
    %p35 = scmp.eq.s32.totalorder %s14, 0
    %p36 = por %p34, %p35
    %s37 = ssub.s32 %s8, %s15
    %p38 = scmp.eq.s32.totalorder %s37, 0
    %s40 = sadd.s32 %s39, 1
    %s41 = scalar_select %p38, %s39, %s40
    %p44 = pneg %p38
    %p45 = scmp.eq.s32.totalorder %s8, 1
    %p46 = por %p44, %p45
    %p47 = scmp.ne.s32.totalorder %s39, %s42
    %p48 = scmp.eq.s32.totalorder %s8, 0
    %p49 = por %p47, %p48
    %p50 = scmp.ne.s32.totalorder %s39, %s42
    %p51 = scmp.eq.s32.totalorder %s13, 1
    %p52 = por %p50, %p51
    %p53 = scmp.ne.s32.totalorder %s42, %s43
    %p54 = scmp.eq.s32.totalorder %s13, 0
    %p55 = por %p53, %p54
    %p56 = scmp.ne.s32.totalorder %s42, %s43
    %p57 = scmp.eq.s32.totalorder %s14, 1
    %p58 = por %p56, %p57
    %p60 = scmp.ne.s32.totalorder %s43, %s59
    %p61 = scmp.eq.s32.totalorder %s14, 0
    %p62 = por %p60, %p61
    %s63 = ssub.s32 %s8, %s15
    %p64 = scmp.eq.s32.totalorder %s63, 0
    %s66 = sadd.s32 %s65, 1
    %s67 = scalar_select %p64, %s65, %s66
    %p70 = pneg %p64
    %p71 = scmp.eq.s32.totalorder %s8, 1
    %p72 = por %p70, %p71
    %p73 = scmp.ne.s32.totalorder %s65, %s68
    %p74 = scmp.eq.s32.totalorder %s8, 0
    %p75 = por %p73, %p74
    %p76 = scmp.ne.s32.totalorder %s65, %s68
    %p77 = scmp.eq.s32.totalorder %s13, 1
    %p78 = por %p76, %p77
    %p79 = scmp.ne.s32.totalorder %s68, %s69
    %p80 = scmp.eq.s32.totalorder %s13, 0
    %p81 = por %p79, %p80
    %p82 = scmp.ne.s32.totalorder %s68, %s69
    %p83 = scmp.eq.s32.totalorder %s14, 1
    %p84 = por %p82, %p83
    %p86 = scmp.ne.s32.totalorder %s69, %s85
    %p87 = scmp.eq.s32.totalorder %s14, 0
    %p88 = por %p86, %p87
    %p89 = scmp.le.s32.totalorder 1, %s8
    %p90 = scmp.lt.s32.totalorder %s8, 3
    %p91 = pnand %p89, %p90
    %p92 = pneg %p91
    // Predicated region
    $region9: #{tpu_custom_call.1} parent=5 // pred_check
      _
    $region10: #{tpu_custom_call.1} parent=5 // pred_check_branch
      %94 = sbr.rel (%p91) target = $region12
    $region11: #{tpu_custom_call.1} parent=5 // pred_region
      %s95 = ssub.s32 %s8, 1
      // Predicated region
      $region13: #{tpu_custom_call.1} parent=11 // pred_check
        %p96 = pneg %p29
      $region14: #{tpu_custom_call.1} parent=11 // pred_check_branch
        %98 = sbr.rel (%p96) target = $region16
      $region15: #{tpu_custom_call.1} parent=11 // pred_region
        _
      $region16: #{tpu_custom_call.1} parent=11 // pred_fallthru
        _
    $region12: #{tpu_custom_call.1} parent=5 // pred_fallthru
      _
    %p99 = scmp.lt.s32.totalorder %s8, 2
    // Predicated region
    $region17: #{tpu_custom_call.1} parent=5 // pred_check
      %p100 = pneg %p99
    $region18: #{tpu_custom_call.1} parent=5 // pred_check_branch
      %102 = sbr.rel (%p100) target = $region20
    $region19: #{tpu_custom_call.1} parent=5 // pred_region
      // Predicated region
      $region21: #{tpu_custom_call.1} parent=19 // pred_check
        %p103 = pneg %p49
      $region22: #{tpu_custom_call.1} parent=19 // pred_check_branch
        %105 = sbr.rel (%p103) target = $region24
      $region23: #{tpu_custom_call.1} parent=19 // pred_region
        %s106 = smul.u32 16, %s8
        %p107 = scmp.lt.s32.totalorder %s106, 31
        %s108 = scalar_select %p107, %s106, 31
        %s109 = smul.addr %s108, 8
        %s110 = scalar_lea.vmem %s1, %s109
        %s111 = smul.u32 16, %s8
      $region24: #{tpu_custom_call.1} parent=19 // pred_fallthru
        _
    $region20: #{tpu_custom_call.1} parent=5 // pred_fallthru
      _
    %p112 = scmp.le.s32.totalorder 1, %s8
    %p113 = scmp.lt.s32.totalorder %s8, 3
    %p114 = pnand %p112, %p113
    %p115 = pneg %p114
    // Predicated region
    $region25: #{tpu_custom_call.1} parent=5 // pred_check
      _
    $region26: #{tpu_custom_call.1} parent=5 // pred_check_branch
      %117 = sbr.rel (%p114) target = $region28
    $region27: #{tpu_custom_call.1} parent=5 // pred_region
      %s118 = ssub.s32 %s8, 1
      %p119 = pneg %p29
      %p120 = pneg %p26
      %s121 = smul.u32 16, %s13
      %p122 = scmp.lt.s32.totalorder %s121, 31
      %s123 = scalar_select %p122, %s121, 31
      %s124 = smul.addr %s123, 8
      %s125 = scalar_lea.vmem %s1, %s124
      %p126 = pneg %p55
      %p127 = pneg %p52
      %p128 = pneg %p81
      %p129 = pneg %p78
      %s130 = smul.u32 16, %s13
      %p131 = scmp.lt.s32.totalorder %s130, 31
      %s132 = scalar_select %p131, %s130, 31
      %s133 = smul.addr %s132, 8
      %s134 = scalar_lea.vmem %s2, %s133
      %s135 = smul.u32 16, %s13
      %p136 = scmp.lt.s32.totalorder %s135, 31
      %s137 = scalar_select %p136, %s135, 31
      %s138 = smul.addr %s137, 8
      %s139 = scalar_lea.vmem %s1, %s138
      %s140 = smul.u32 16, %s13
      %s141 = smul.u32 16, %s13
      %p142 = scmp.lt.s32.totalorder %s141, 31
      %s143 = scalar_select %p142, %s141, 31
      %s144 = smul.addr %s143, 8
      %s145 = scalar_lea.vmem %s2, %s144
      %s146 = smul.u32 16, %s13
      %v147 = vld [vmem:[%s139] sm:$0xff]
      %v148 = vld [vmem:[%s139 + $0x8] sm:$0xff]
      %v149 = vld [vmem:[%s139 + $0x10] sm:$0xff]
      %v150 = vld [vmem:[%s139 + $0x18] sm:$0xff]
      %v151 = vld [vmem:[%s139 + $0x20] sm:$0xff]
      %v152 = vld [vmem:[%s139 + $0x28] sm:$0xff]
      %v153 = vld [vmem:[%s139 + $0x30] sm:$0xff]
      %v154 = vld [vmem:[%s139 + $0x38] sm:$0xff]
      %v155 = vld [vmem:[%s139 + $0x40] sm:$0xff]
      %v156 = vld [vmem:[%s139 + $0x48] sm:$0xff]
      %v157 = vld [vmem:[%s139 + $0x50] sm:$0xff]
      %v158 = vld [vmem:[%s139 + $0x58] sm:$0xff]
      %v159 = vld [vmem:[%s139 + $0x60] sm:$0xff]
      %v160 = vld [vmem:[%s139 + $0x68] sm:$0xff]
      %v161 = vld [vmem:[%s139 + $0x70] sm:$0xff]
      %v162 = vld [vmem:[%s139 + $0x78] sm:$0xff]
      %v163 = vxor.u32 %v147, 2147483648
      %v164 = vxor.u32 %v148, 2147483648
      %v165 = vxor.u32 %v149, 2147483648
      %v166 = vxor.u32 %v150, 2147483648
      %v167 = vxor.u32 %v151, 2147483648
      %v168 = vxor.u32 %v152, 2147483648
      %v169 = vxor.u32 %v153, 2147483648
      %v170 = vxor.u32 %v154, 2147483648
      %v171 = vxor.u32 %v155, 2147483648
      %v172 = vxor.u32 %v156, 2147483648
      %v173 = vxor.u32 %v157, 2147483648
      %v174 = vxor.u32 %v158, 2147483648
      %v175 = vxor.u32 %v159, 2147483648
      %v176 = vxor.u32 %v160, 2147483648
      %v177 = vxor.u32 %v161, 2147483648
      %v178 = vxor.u32 %v162, 2147483648
      %v179 = vmul.f32 %v163, 1.442695
      %v180 = vpow.pop %v179
      %v181 = vmul.f32 %v164, 1.442695
      %v182 = vpow.pop %v181
      %v183 = vmul.f32 %v165, 1.442695
      %v184 = vpow.pop %v183
      %v185 = vmul.f32 %v166, 1.442695
      %v186 = vpow.pop %v185
      %v187 = vmul.f32 %v167, 1.442695
      %v188 = vpow.pop %v187
      %v189 = vmul.f32 %v168, 1.442695
      %v190 = vpow.pop %v189
      %v191 = vmul.f32 %v169, 1.442695
      %v192 = vpow.pop %v191
      %v193 = vmul.f32 %v170, 1.442695
      %v194 = vpow.pop %v193
      %v195 = vmul.f32 %v171, 1.442695
      %v196 = vpow.pop %v195
      %v197 = vmul.f32 %v172, 1.442695
      %v198 = vpow.pop %v197
      %v199 = vmul.f32 %v173, 1.442695
      %v200 = vpow.pop %v199
      %v201 = vmul.f32 %v174, 1.442695
      %v202 = vpow.pop %v201
      %v203 = vmul.f32 %v175, 1.442695
      %v204 = vpow.pop %v203
      %v205 = vmul.f32 %v176, 1.442695
      %v206 = vpow.pop %v205
      %v207 = vmul.f32 %v177, 1.442695
      %v208 = vpow.pop %v207
      %v209 = vmul.f32 %v178, 1.442695
      %v210 = vpow.pop %v209
      %v211 = vadd.f32 %v180, 1.0
      %v212 = vadd.f32 %v182, 1.0
      %v213 = vadd.f32 %v184, 1.0
      %v214 = vadd.f32 %v186, 1.0
      %v215 = vadd.f32 %v188, 1.0
      %v216 = vadd.f32 %v190, 1.0
      %v217 = vadd.f32 %v192, 1.0
      %v218 = vadd.f32 %v194, 1.0
      %v219 = vadd.f32 %v196, 1.0
      %v220 = vadd.f32 %v198, 1.0
      %v221 = vadd.f32 %v200, 1.0
      %v222 = vadd.f32 %v202, 1.0
      %v223 = vadd.f32 %v204, 1.0
      %v224 = vadd.f32 %v206, 1.0
      %v225 = vadd.f32 %v208, 1.0
      %v226 = vadd.f32 %v210, 1.0
      %v227 = vrcp.pop %v211
      %v228 = vmul.f32 1.0, %v227
      %v229 = vrcp.pop %v212
      %v230 = vmul.f32 1.0, %v229
      %v231 = vrcp.pop %v213
      %v232 = vmul.f32 1.0, %v231
      %v233 = vrcp.pop %v214
      %v234 = vmul.f32 1.0, %v233
      %v235 = vrcp.pop %v215
      %v236 = vmul.f32 1.0, %v235
      %v237 = vrcp.pop %v216
      %v238 = vmul.f32 1.0, %v237
      %v239 = vrcp.pop %v217
      %v240 = vmul.f32 1.0, %v239
      %v241 = vrcp.pop %v218
      %v242 = vmul.f32 1.0, %v241
      %v243 = vrcp.pop %v219
      %v244 = vmul.f32 1.0, %v243
      %v245 = vrcp.pop %v220
      %v246 = vmul.f32 1.0, %v245
      %v247 = vrcp.pop %v221
      %v248 = vmul.f32 1.0, %v247
      %v249 = vrcp.pop %v222
      %v250 = vmul.f32 1.0, %v249
      %v251 = vrcp.pop %v223
      %v252 = vmul.f32 1.0, %v251
      %v253 = vrcp.pop %v224
      %v254 = vmul.f32 1.0, %v253
      %v255 = vrcp.pop %v225
      %v256 = vmul.f32 1.0, %v255
      %v257 = vrcp.pop %v226
      %v258 = vmul.f32 1.0, %v257
      %v259 = vmul.f32 %v147, %v228
      %v260 = vmul.f32 %v148, %v230
      %v261 = vmul.f32 %v149, %v232
      %v262 = vmul.f32 %v150, %v234
      %v263 = vmul.f32 %v151, %v236
      %v264 = vmul.f32 %v152, %v238
      %v265 = vmul.f32 %v153, %v240
      %v266 = vmul.f32 %v154, %v242
      %v267 = vmul.f32 %v155, %v244
      %v268 = vmul.f32 %v156, %v246
      %v269 = vmul.f32 %v157, %v248
      %v270 = vmul.f32 %v158, %v250
      %v271 = vmul.f32 %v159, %v252
      %v272 = vmul.f32 %v160, %v254
      %v273 = vmul.f32 %v161, %v256
      %v274 = vmul.f32 %v162, %v258
      %v275 = vmul.f32 %v259, 1.6765325
      %v276 = vmul.f32 %v260, 1.6765325
      %v277 = vmul.f32 %v261, 1.6765325
      %v278 = vmul.f32 %v262, 1.6765325
      %v279 = vmul.f32 %v263, 1.6765325
      %v280 = vmul.f32 %v264, 1.6765325
      %v281 = vmul.f32 %v265, 1.6765325
      %v282 = vmul.f32 %v266, 1.6765325
      %v283 = vmul.f32 %v267, 1.6765325
      %v284 = vmul.f32 %v268, 1.6765325
      %v285 = vmul.f32 %v269, 1.6765325
      %v286 = vmul.f32 %v270, 1.6765325
      %v287 = vmul.f32 %v271, 1.6765325
      %v288 = vmul.f32 %v272, 1.6765325
      %v289 = vmul.f32 %v273, 1.6765325
      %v290 = vmul.f32 %v274, 1.6765325
      %v291 = vmul.f32 %v228, 1.8462286
      %v292 = vmul.f32 %v230, 1.8462286
      %v293 = vmul.f32 %v232, 1.8462286
      %v294 = vmul.f32 %v234, 1.8462286
      %v295 = vmul.f32 %v236, 1.8462286
      %v296 = vmul.f32 %v238, 1.8462286
      %v297 = vmul.f32 %v240, 1.8462286
      %v298 = vmul.f32 %v242, 1.8462286
      %v299 = vmul.f32 %v244, 1.8462286
      %v300 = vmul.f32 %v246, 1.8462286
      %v301 = vmul.f32 %v248, 1.8462286
      %v302 = vmul.f32 %v250, 1.8462286
      %v303 = vmul.f32 %v252, 1.8462286
      %v304 = vmul.f32 %v254, 1.8462286
      %v305 = vmul.f32 %v256, 1.8462286
      %v306 = vmul.f32 %v258, 1.8462286
      %v307 = vld [vmem:[%s0] sm:$0xff]
      %v308 = vpack.c.bf16 %v292, %v291
      %v309 = vpack.c.bf16 %v294, %v293
      %v310 = vpack.c.bf16 %v296, %v295
      %v311 = vpack.c.bf16 %v298, %v297
      %v312 = vpack.c.bf16 %v300, %v299
      %v313 = vpack.c.bf16 %v302, %v301
      %v314 = vpack.c.bf16 %v304, %v303
      %v315 = vpack.c.bf16 %v306, %v305
      %v316 = vunpack.c.l.bf16 %v308
      %v317 = vunpack.c.h.bf16 %v308
      %v318 = vunpack.c.l.bf16 %v309
      %v319 = vunpack.c.h.bf16 %v309
      %v320 = vunpack.c.l.bf16 %v310
      %v321 = vunpack.c.h.bf16 %v310
      %v322 = vunpack.c.l.bf16 %v311
      %v323 = vunpack.c.h.bf16 %v311
      %v324 = vunpack.c.l.bf16 %v312
      %v325 = vunpack.c.h.bf16 %v312
      %v326 = vunpack.c.l.bf16 %v313
      %v327 = vunpack.c.h.bf16 %v313
      %v328 = vunpack.c.l.bf16 %v314
      %v329 = vunpack.c.h.bf16 %v314
      %v330 = vunpack.c.l.bf16 %v315
      %v331 = vunpack.c.h.bf16 %v315
      %v332 = vsub.f32 %v291, %v316
      %v333 = vsub.f32 %v292, %v317
      %v334 = vsub.f32 %v293, %v318
      %v335 = vsub.f32 %v294, %v319
      %v336 = vsub.f32 %v295, %v320
      %v337 = vsub.f32 %v296, %v321
      %v338 = vsub.f32 %v297, %v322
      %v339 = vsub.f32 %v298, %v323
      %v340 = vsub.f32 %v299, %v324
      %v341 = vsub.f32 %v300, %v325
      %v342 = vsub.f32 %v301, %v326
      %v343 = vsub.f32 %v302, %v327
      %v344 = vsub.f32 %v303, %v328
      %v345 = vsub.f32 %v304, %v329
      %v346 = vsub.f32 %v305, %v330
      %v347 = vsub.f32 %v306, %v331
      %364 = vrot.lane.b32.xlu0 %v332, 120
      %v365 = vpop.permute.xlu0 %364
      %366 = vrot.lane.b32.xlu0 %v333, 120
      %v367 = vpop.permute.xlu0 %366
      %368 = vrot.lane.b32.xlu0 %v334, 120
      %v369 = vpop.permute.xlu0 %368
      %370 = vrot.lane.b32.xlu0 %v335, 120
      %v371 = vpop.permute.xlu0 %370
      %372 = vrot.lane.b32.xlu0 %v336, 120
      %v373 = vpop.permute.xlu0 %372
      %374 = vrot.lane.b32.xlu0 %v337, 120
      %v375 = vpop.permute.xlu0 %374
      %376 = vrot.lane.b32.xlu0 %v338, 120
      %v377 = vpop.permute.xlu0 %376
      %378 = vrot.lane.b32.xlu0 %v339, 120
      %v379 = vpop.permute.xlu0 %378
      %380 = vrot.lane.b32.xlu0 %v340, 120
      %v381 = vpop.permute.xlu0 %380
      %382 = vrot.lane.b32.xlu0 %v341, 120
      %v383 = vpop.permute.xlu0 %382
      %384 = vrot.lane.b32.xlu0 %v342, 120
      %v385 = vpop.permute.xlu0 %384
      %386 = vrot.lane.b32.xlu0 %v343, 120
      %v387 = vpop.permute.xlu0 %386
      %388 = vrot.lane.b32.xlu0 %v344, 120
      %v389 = vpop.permute.xlu0 %388
      %390 = vrot.lane.b32.xlu0 %v345, 120
      %v391 = vpop.permute.xlu0 %390
      %392 = vrot.lane.b32.xlu0 %v346, 120
      %v393 = vpop.permute.xlu0 %392
      %394 = vrot.lane.b32.xlu0 %v347, 120
      %v395 = vpop.permute.xlu0 %394
      %vm396 = vcmask 64512
      %v397 = vsel %vm396, %v365, 0
      %v399 = vsel %vm396, %v367, 0
      %v401 = vsel %vm396, %v369, 0
      %v403 = vsel %vm396, %v371, 0
      %v405 = vsel %vm396, %v373, 0
      %v407 = vsel %vm396, %v375, 0
      %v409 = vsel %vm396, %v377, 0
      %v411 = vsel %vm396, %v379, 0
      %v413 = vsel %vm396, %v381, 0
      %v415 = vsel %vm396, %v383, 0
      %v417 = vsel %vm396, %v385, 0
      %v419 = vsel %vm396, %v387, 0
      %v421 = vsel %vm396, %v389, 0
      %v423 = vsel %vm396, %v391, 0
      %v425 = vsel %vm396, %v393, 0
      %v427 = vsel %vm396, %v395, 0
      %429 = vmatprep.subr.mxu0 0.0
      %430 = vmatpush1.msra.mxu0 0.0
      %431 = vmatprep.subr.mxu0 0.0
      %432 = vmatpush1.msra.mxu0 0.0
      %433 = vmatprep.subr.mxu0 0.0
      %434 = vmatpush1.msra.mxu0 0.0
      %435 = vmatprep.subr.mxu0 0.0
      %436 = vmatpush1.msra.mxu0 0.0
      %437 = vmatprep.subr.mxu0 0.0
      %438 = vmatpush1.msra.mxu0 0.0
      %439 = vmatprep.subr.mxu0 0.0
      %440 = vmatpush1.msra.mxu0 0.0
      %441 = vmatprep.subr.mxu0 0.0
      %442 = vmatpush1.msra.mxu0 0.0
      %443 = vmatprep.subr.mxu0 0.0
      %444 = vmatpush1.msra.mxu0 0.0
      %445 = vmatprep.subr.mxu0 0.0
      %446 = vmatpush1.msra.mxu0 0.0
      %447 = vmatprep.subr.mxu0 0.0
      %448 = vmatpush1.msra.mxu0 0.0
      %449 = vmatprep.subr.mxu0 0.0
      %450 = vmatpush1.msra.mxu0 0.0
      %451 = vmatprep.subr.mxu0 0.0
      %452 = vmatpush1.msra.mxu0 0.0
      %453 = vmatprep.subr.mxu0 0.0
      %454 = vmatpush1.msra.mxu0 0.0
      %455 = vmatprep.subr.mxu0 0.0
      %456 = vmatpush1.msra.mxu0 0.0
      %457 = vmatprep.subr.mxu0 0.0
      %458 = vmatpush1.msra.mxu0 0.0
      %459 = vmatprep.subr.mxu0 0.0
      %460 = vmatpush1.msra.mxu0 %v307
      %461 = vmatprep.subr.mxu0 0.0
      %462 = vmatpush2.msra.mxu0 0.0
      %463 = vmatprep.subr.mxu0 0.0
      %464 = vmatpush2.msra.mxu0 0.0
      %465 = vmatprep.subr.mxu0 0.0
      %466 = vmatpush2.msra.mxu0 0.0
      %467 = vmatprep.subr.mxu0 0.0
      %468 = vmatpush2.msra.mxu0 0.0
      %469 = vmatprep.subr.mxu0 0.0
      %470 = vmatpush2.msra.mxu0 0.0
      %471 = vmatprep.subr.mxu0 0.0
      %472 = vmatpush2.msra.mxu0 0.0
      %473 = vmatprep.subr.mxu0 0.0
      %474 = vmatpush2.msra.mxu0 0.0
      %475 = vmatprep.subr.mxu0 0.0
      %476 = vmatpush2.msra.mxu0 0.0
      %477 = vmatprep.subr.mxu0 0.0
      %478 = vmatpush2.msra.mxu0 0.0
      %479 = vmatprep.subr.mxu0 0.0
      %480 = vmatpush2.msra.mxu0 0.0
      %481 = vmatprep.subr.mxu0 0.0
      %482 = vmatpush2.msra.mxu0 0.0
      %483 = vmatprep.subr.mxu0 0.0
      %484 = vmatpush2.msra.mxu0 0.0
      %485 = vmatprep.subr.mxu0 0.0
      %486 = vmatpush2.msra.mxu0 0.0
      %487 = vmatprep.subr.mxu0 0.0
      %488 = vmatpush2.msra.mxu0 0.0
      %489 = vmatprep.subr.mxu0 0.0
      %490 = vmatpush2.msra.mxu0 0.0
      %491 = vmatprep.subr.mxu0 0.0
      %492 = vmatpush2.msra.mxu0 0.0
      %493 = vmatprep.mubr.f32.mxu0 0.0
      %494 = vmatmul.mubr.f32.gmra.mxu0 %v397
      %v495 = vpop.f32.mrf.mxu0
      %v496 = vadd.f32 0.0, %v495
      %v497 = vpop.f32.mrf.mxu0
      %498 = vmatprep.mubr.f32.mxu0 0.0
      %499 = vmatmul.mubr.f32.gmra.mxu0 %v399
      %v500 = vpop.f32.mrf.mxu0
      %v501 = vadd.f32 0.0, %v500
      %v502 = vpop.f32.mrf.mxu0
      %503 = vmatprep.mubr.f32.mxu0 0.0
      %504 = vmatmul.mubr.f32.gmra.mxu0 %v401
      %v505 = vpop.f32.mrf.mxu0
      %v506 = vadd.f32 0.0, %v505
      %v507 = vpop.f32.mrf.mxu0
      %508 = vmatprep.mubr.f32.mxu0 0.0
      %509 = vmatmul.mubr.f32.gmra.mxu0 %v403
      %v510 = vpop.f32.mrf.mxu0
      %v511 = vadd.f32 0.0, %v510
      %v512 = vpop.f32.mrf.mxu0
      %513 = vmatprep.mubr.f32.mxu0 0.0
      %514 = vmatmul.mubr.f32.gmra.mxu0 %v405
      %v515 = vpop.f32.mrf.mxu0
      %v516 = vadd.f32 0.0, %v515
      %v517 = vpop.f32.mrf.mxu0
      %518 = vmatprep.mubr.f32.mxu0 0.0
      %519 = vmatmul.mubr.f32.gmra.mxu0 %v407
      %v520 = vpop.f32.mrf.mxu0
      %v521 = vadd.f32 0.0, %v520
      %v522 = vpop.f32.mrf.mxu0
      %523 = vmatprep.mubr.f32.mxu0 0.0
      %524 = vmatmul.mubr.f32.gmra.mxu0 %v409
      %v525 = vpop.f32.mrf.mxu0
      %v526 = vadd.f32 0.0, %v525
      %v527 = vpop.f32.mrf.mxu0
      %528 = vmatprep.mubr.f32.mxu0 0.0
      %529 = vmatmul.mubr.f32.gmra.mxu0 %v411
      %v530 = vpop.f32.mrf.mxu0
      %v531 = vadd.f32 0.0, %v530
      %v532 = vpop.f32.mrf.mxu0
      %533 = vmatprep.mubr.f32.mxu0 0.0
      %534 = vmatmul.mubr.f32.gmra.mxu0 %v413
      %v535 = vpop.f32.mrf.mxu0
      %v536 = vadd.f32 0.0, %v535
      %v537 = vpop.f32.mrf.mxu0
      %538 = vmatprep.mubr.f32.mxu0 0.0
      %539 = vmatmul.mubr.f32.gmra.mxu0 %v415
      %v540 = vpop.f32.mrf.mxu0
      %v541 = vadd.f32 0.0, %v540
      %v542 = vpop.f32.mrf.mxu0
      %543 = vmatprep.mubr.f32.mxu0 0.0
      %544 = vmatmul.mubr.f32.gmra.mxu0 %v417
      %v545 = vpop.f32.mrf.mxu0
      %v546 = vadd.f32 0.0, %v545
      %v547 = vpop.f32.mrf.mxu0
      %548 = vmatprep.mubr.f32.mxu0 0.0
      %549 = vmatmul.mubr.f32.gmra.mxu0 %v419
      %v550 = vpop.f32.mrf.mxu0
      %v551 = vadd.f32 0.0, %v550
      %v552 = vpop.f32.mrf.mxu0
      %553 = vmatprep.mubr.f32.mxu0 0.0
      %554 = vmatmul.mubr.f32.gmra.mxu0 %v421
      %v555 = vpop.f32.mrf.mxu0
      %v556 = vadd.f32 0.0, %v555
      %v557 = vpop.f32.mrf.mxu0
      %558 = vmatprep.mubr.f32.mxu0 0.0
      %559 = vmatmul.mubr.f32.gmra.mxu0 %v423
      %v560 = vpop.f32.mrf.mxu0
      %v561 = vadd.f32 0.0, %v560
      %v562 = vpop.f32.mrf.mxu0
      %563 = vmatprep.mubr.f32.mxu0 0.0
      %564 = vmatmul.mubr.f32.gmra.mxu0 %v425
      %v565 = vpop.f32.mrf.mxu0
      %v566 = vadd.f32 0.0, %v565
      %v567 = vpop.f32.mrf.mxu0
      %568 = vmatprep.mubr.f32.mxu0 0.0
      %569 = vmatmul.mubr.f32.gmra.mxu0 %v427
      %v570 = vpop.f32.mrf.mxu0
      %v571 = vadd.f32 0.0, %v570
      %v572 = vpop.f32.mrf.mxu0
      %573 = vdwg.mxu0
      %590 = vrot.lane.b32.xlu0 %v316, 120
      %v591 = vpop.permute.xlu0 %590
      %592 = vrot.lane.b32.xlu0 %v317, 120
      %v593 = vpop.permute.xlu0 %592
      %594 = vrot.lane.b32.xlu0 %v318, 120
      %v595 = vpop.permute.xlu0 %594
      %596 = vrot.lane.b32.xlu0 %v319, 120
      %v597 = vpop.permute.xlu0 %596
      %598 = vrot.lane.b32.xlu0 %v320, 120
      %v599 = vpop.permute.xlu0 %598
      %600 = vrot.lane.b32.xlu0 %v321, 120
      %v601 = vpop.permute.xlu0 %600
      %602 = vrot.lane.b32.xlu0 %v322, 120
      %v603 = vpop.permute.xlu0 %602
      %604 = vrot.lane.b32.xlu0 %v323, 120
      %v605 = vpop.permute.xlu0 %604
      %606 = vrot.lane.b32.xlu0 %v324, 120
      %v607 = vpop.permute.xlu0 %606
      %608 = vrot.lane.b32.xlu0 %v325, 120
      %v609 = vpop.permute.xlu0 %608
      %610 = vrot.lane.b32.xlu0 %v326, 120
      %v611 = vpop.permute.xlu0 %610
      %612 = vrot.lane.b32.xlu0 %v327, 120
      %v613 = vpop.permute.xlu0 %612
      %614 = vrot.lane.b32.xlu0 %v328, 120
      %v615 = vpop.permute.xlu0 %614
      %616 = vrot.lane.b32.xlu0 %v329, 120
      %v617 = vpop.permute.xlu0 %616
      %618 = vrot.lane.b32.xlu0 %v330, 120
      %v619 = vpop.permute.xlu0 %618
      %620 = vrot.lane.b32.xlu0 %v331, 120
      %v621 = vpop.permute.xlu0 %620
      %v622 = vsel %vm396, %v591, 0
      %v624 = vsel %vm396, %v593, 0
      %v626 = vsel %vm396, %v595, 0
      %v628 = vsel %vm396, %v597, 0
      %v630 = vsel %vm396, %v599, 0
      %v632 = vsel %vm396, %v601, 0
      %v634 = vsel %vm396, %v603, 0
      %v636 = vsel %vm396, %v605, 0
      %v638 = vsel %vm396, %v607, 0
      %v640 = vsel %vm396, %v609, 0
      %v642 = vsel %vm396, %v611, 0
      %v644 = vsel %vm396, %v613, 0
      %v646 = vsel %vm396, %v615, 0
      %v648 = vsel %vm396, %v617, 0
      %v650 = vsel %vm396, %v619, 0
      %v652 = vsel %vm396, %v621, 0
      %654 = vmatprep.subr.mxu0 0.0
      %655 = vmatpush1.msra.mxu0 0.0
      %656 = vmatprep.subr.mxu0 0.0
      %657 = vmatpush1.msra.mxu0 0.0
      %658 = vmatprep.subr.mxu0 0.0
      %659 = vmatpush1.msra.mxu0 0.0
      %660 = vmatprep.subr.mxu0 0.0
      %661 = vmatpush1.msra.mxu0 0.0
      %662 = vmatprep.subr.mxu0 0.0
      %663 = vmatpush1.msra.mxu0 0.0
      %664 = vmatprep.subr.mxu0 0.0
      %665 = vmatpush1.msra.mxu0 0.0
      %666 = vmatprep.subr.mxu0 0.0
      %667 = vmatpush1.msra.mxu0 0.0
      %668 = vmatprep.subr.mxu0 0.0
      %669 = vmatpush1.msra.mxu0 0.0
      %670 = vmatprep.subr.mxu0 0.0
      %671 = vmatpush1.msra.mxu0 0.0
      %672 = vmatprep.subr.mxu0 0.0
      %673 = vmatpush1.msra.mxu0 0.0
      %674 = vmatprep.subr.mxu0 0.0
      %675 = vmatpush1.msra.mxu0 0.0
      %676 = vmatprep.subr.mxu0 0.0
      %677 = vmatpush1.msra.mxu0 0.0
      %678 = vmatprep.subr.mxu0 0.0
      %679 = vmatpush1.msra.mxu0 0.0
      %680 = vmatprep.subr.mxu0 0.0
      %681 = vmatpush1.msra.mxu0 0.0
      %682 = vmatprep.subr.mxu0 0.0
      %683 = vmatpush1.msra.mxu0 0.0
      %684 = vmatprep.subr.mxu0 0.0
      %685 = vmatpush1.msra.mxu0 %v307
      %686 = vmatprep.subr.mxu0 0.0
      %687 = vmatpush2.msra.mxu0 0.0
      %688 = vmatprep.subr.mxu0 0.0
      %689 = vmatpush2.msra.mxu0 0.0
      %690 = vmatprep.subr.mxu0 0.0
      %691 = vmatpush2.msra.mxu0 0.0
      %692 = vmatprep.subr.mxu0 0.0
      %693 = vmatpush2.msra.mxu0 0.0
      %694 = vmatprep.subr.mxu0 0.0
      %695 = vmatpush2.msra.mxu0 0.0
      %696 = vmatprep.subr.mxu0 0.0
      %697 = vmatpush2.msra.mxu0 0.0
      %698 = vmatprep.subr.mxu0 0.0
      %699 = vmatpush2.msra.mxu0 0.0
      %700 = vmatprep.subr.mxu0 0.0
      %701 = vmatpush2.msra.mxu0 0.0
      %702 = vmatprep.subr.mxu0 0.0
      %703 = vmatpush2.msra.mxu0 0.0
      %704 = vmatprep.subr.mxu0 0.0
      %705 = vmatpush2.msra.mxu0 0.0
      %706 = vmatprep.subr.mxu0 0.0
      %707 = vmatpush2.msra.mxu0 0.0
      %708 = vmatprep.subr.mxu0 0.0
      %709 = vmatpush2.msra.mxu0 0.0
      %710 = vmatprep.subr.mxu0 0.0
      %711 = vmatpush2.msra.mxu0 0.0
      %712 = vmatprep.subr.mxu0 0.0
      %713 = vmatpush2.msra.mxu0 0.0
      %714 = vmatprep.subr.mxu0 0.0
      %715 = vmatpush2.msra.mxu0 0.0
      %716 = vmatprep.subr.mxu0 0.0
      %717 = vmatpush2.msra.mxu0 0.0
      %718 = vmatprep.mubr.f32.mxu0 0.0
      %719 = vmatmul.mubr.f32.gmra.mxu0 %v622
      %v720 = vpop.f32.mrf.mxu0
      %v721 = vadd.f32 %v496, %v720
      %v722 = vpop.f32.mrf.mxu0
      %723 = vmatprep.mubr.f32.mxu0 0.0
      %724 = vmatmul.mubr.f32.gmra.mxu0 %v624
      %v725 = vpop.f32.mrf.mxu0
      %v726 = vadd.f32 %v501, %v725
      %v727 = vpop.f32.mrf.mxu0
      %728 = vmatprep.mubr.f32.mxu0 0.0
      %729 = vmatmul.mubr.f32.gmra.mxu0 %v626
      %v730 = vpop.f32.mrf.mxu0
      %v731 = vadd.f32 %v506, %v730
      %v732 = vpop.f32.mrf.mxu0
      %733 = vmatprep.mubr.f32.mxu0 0.0
      %734 = vmatmul.mubr.f32.gmra.mxu0 %v628
      %v735 = vpop.f32.mrf.mxu0
      %v736 = vadd.f32 %v511, %v735
      %v737 = vpop.f32.mrf.mxu0
      %738 = vmatprep.mubr.f32.mxu0 0.0
      %739 = vmatmul.mubr.f32.gmra.mxu0 %v630
      %v740 = vpop.f32.mrf.mxu0
      %v741 = vadd.f32 %v516, %v740
      %v742 = vpop.f32.mrf.mxu0
      %743 = vmatprep.mubr.f32.mxu0 0.0
      %744 = vmatmul.mubr.f32.gmra.mxu0 %v632
      %v745 = vpop.f32.mrf.mxu0
      %v746 = vadd.f32 %v521, %v745
      %v747 = vpop.f32.mrf.mxu0
      %748 = vmatprep.mubr.f32.mxu0 0.0
      %749 = vmatmul.mubr.f32.gmra.mxu0 %v634
      %v750 = vpop.f32.mrf.mxu0
      %v751 = vadd.f32 %v526, %v750
      %v752 = vpop.f32.mrf.mxu0
      %753 = vmatprep.mubr.f32.mxu0 0.0
      %754 = vmatmul.mubr.f32.gmra.mxu0 %v636
      %v755 = vpop.f32.mrf.mxu0
      %v756 = vadd.f32 %v531, %v755
      %v757 = vpop.f32.mrf.mxu0
      %758 = vmatprep.mubr.f32.mxu0 0.0
      %759 = vmatmul.mubr.f32.gmra.mxu0 %v638
      %v760 = vpop.f32.mrf.mxu0
      %v761 = vadd.f32 %v536, %v760
      %v762 = vpop.f32.mrf.mxu0
      %763 = vmatprep.mubr.f32.mxu0 0.0
      %764 = vmatmul.mubr.f32.gmra.mxu0 %v640
      %v765 = vpop.f32.mrf.mxu0
      %v766 = vadd.f32 %v541, %v765
      %v767 = vpop.f32.mrf.mxu0
      %768 = vmatprep.mubr.f32.mxu0 0.0
      %769 = vmatmul.mubr.f32.gmra.mxu0 %v642
      %v770 = vpop.f32.mrf.mxu0
      %v771 = vadd.f32 %v546, %v770
      %v772 = vpop.f32.mrf.mxu0
      %773 = vmatprep.mubr.f32.mxu0 0.0
      %774 = vmatmul.mubr.f32.gmra.mxu0 %v644
      %v775 = vpop.f32.mrf.mxu0
      %v776 = vadd.f32 %v551, %v775
      %v777 = vpop.f32.mrf.mxu0
      %778 = vmatprep.mubr.f32.mxu0 0.0
      %779 = vmatmul.mubr.f32.gmra.mxu0 %v646
      %v780 = vpop.f32.mrf.mxu0
      %v781 = vadd.f32 %v556, %v780
      %v782 = vpop.f32.mrf.mxu0
      %783 = vmatprep.mubr.f32.mxu0 0.0
      %784 = vmatmul.mubr.f32.gmra.mxu0 %v648
      %v785 = vpop.f32.mrf.mxu0
      %v786 = vadd.f32 %v561, %v785
      %v787 = vpop.f32.mrf.mxu0
      %788 = vmatprep.mubr.f32.mxu0 0.0
      %789 = vmatmul.mubr.f32.gmra.mxu0 %v650
      %v790 = vpop.f32.mrf.mxu0
      %v791 = vadd.f32 %v566, %v790
      %v792 = vpop.f32.mrf.mxu0
      %793 = vmatprep.mubr.f32.mxu0 0.0
      %794 = vmatmul.mubr.f32.gmra.mxu0 %v652
      %v795 = vpop.f32.mrf.mxu0
      %v796 = vadd.f32 %v571, %v795
      %v797 = vpop.f32.mrf.mxu0
      %798 = vdwg.mxu0
      %815 = vrot.lane.b32.xlu0 %v721, 16
      %v816 = vpop.permute.xlu0 %815
      %817 = vrot.lane.b32.xlu0 %v726, 16
      %v818 = vpop.permute.xlu0 %817
      %819 = vrot.lane.b32.xlu0 %v731, 16
      %v820 = vpop.permute.xlu0 %819
      %821 = vrot.lane.b32.xlu0 %v736, 16
      %v822 = vpop.permute.xlu0 %821
      %823 = vrot.lane.b32.xlu0 %v741, 16
      %v824 = vpop.permute.xlu0 %823
      %825 = vrot.lane.b32.xlu0 %v746, 16
      %v826 = vpop.permute.xlu0 %825
      %827 = vrot.lane.b32.xlu0 %v751, 16
      %v828 = vpop.permute.xlu0 %827
      %829 = vrot.lane.b32.xlu0 %v756, 16
      %v830 = vpop.permute.xlu0 %829
      %831 = vrot.lane.b32.xlu0 %v761, 16
      %v832 = vpop.permute.xlu0 %831
      %833 = vrot.lane.b32.xlu0 %v766, 16
      %v834 = vpop.permute.xlu0 %833
      %835 = vrot.lane.b32.xlu0 %v771, 16
      %v836 = vpop.permute.xlu0 %835
      %837 = vrot.lane.b32.xlu0 %v776, 16
      %v838 = vpop.permute.xlu0 %837
      %839 = vrot.lane.b32.xlu0 %v781, 16
      %v840 = vpop.permute.xlu0 %839
      %841 = vrot.lane.b32.xlu0 %v786, 16
      %v842 = vpop.permute.xlu0 %841
      %843 = vrot.lane.b32.xlu0 %v791, 16
      %v844 = vpop.permute.xlu0 %843
      %845 = vrot.lane.b32.xlu0 %v796, 16
      %v846 = vpop.permute.xlu0 %845
      %v863 = vmul.f32 %v147, %v816
      %v864 = vmul.f32 %v148, %v818
      %v865 = vmul.f32 %v149, %v820
      %v866 = vmul.f32 %v150, %v822
      %v867 = vmul.f32 %v151, %v824
      %v868 = vmul.f32 %v152, %v826
      %v869 = vmul.f32 %v153, %v828
      %v870 = vmul.f32 %v154, %v830
      %v871 = vmul.f32 %v155, %v832
      %v872 = vmul.f32 %v156, %v834
      %v873 = vmul.f32 %v157, %v836
      %v874 = vmul.f32 %v158, %v838
      %v875 = vmul.f32 %v159, %v840
      %v876 = vmul.f32 %v160, %v842
      %v877 = vmul.f32 %v161, %v844
      %v878 = vmul.f32 %v162, %v846
      %895 = vrot.lane.b32.xlu0 %v863, 120
      %v896 = vpop.permute.xlu0 %895
      %897 = vrot.lane.b32.xlu0 %v864, 120
      %v898 = vpop.permute.xlu0 %897
      %899 = vrot.lane.b32.xlu0 %v865, 120
      %v900 = vpop.permute.xlu0 %899
      %901 = vrot.lane.b32.xlu0 %v866, 120
      %v902 = vpop.permute.xlu0 %901
      %903 = vrot.lane.b32.xlu0 %v867, 120
      %v904 = vpop.permute.xlu0 %903
      %905 = vrot.lane.b32.xlu0 %v868, 120
      %v906 = vpop.permute.xlu0 %905
      %907 = vrot.lane.b32.xlu0 %v869, 120
      %v908 = vpop.permute.xlu0 %907
      %909 = vrot.lane.b32.xlu0 %v870, 120
      %v910 = vpop.permute.xlu0 %909
      %911 = vrot.lane.b32.xlu0 %v871, 120
      %v912 = vpop.permute.xlu0 %911
      %913 = vrot.lane.b32.xlu0 %v872, 120
      %v914 = vpop.permute.xlu0 %913
      %915 = vrot.lane.b32.xlu0 %v873, 120
      %v916 = vpop.permute.xlu0 %915
      %917 = vrot.lane.b32.xlu0 %v874, 120
      %v918 = vpop.permute.xlu0 %917
      %919 = vrot.lane.b32.xlu0 %v875, 120
      %v920 = vpop.permute.xlu0 %919
      %921 = vrot.lane.b32.xlu0 %v876, 120
      %v922 = vpop.permute.xlu0 %921
      %923 = vrot.lane.b32.xlu0 %v877, 120
      %v924 = vpop.permute.xlu0 %923
      %925 = vrot.lane.b32.xlu0 %v878, 120
      %v926 = vpop.permute.xlu0 %925
      %v943 = vsel %vm396, %v275, %v896
      %v944 = vsel %vm396, %v276, %v898
      %v945 = vsel %vm396, %v277, %v900
      %v946 = vsel %vm396, %v278, %v902
      %v947 = vsel %vm396, %v279, %v904
      %v948 = vsel %vm396, %v280, %v906
      %v949 = vsel %vm396, %v281, %v908
      %v950 = vsel %vm396, %v282, %v910
      %v951 = vsel %vm396, %v283, %v912
      %v952 = vsel %vm396, %v284, %v914
      %v953 = vsel %vm396, %v285, %v916
      %v954 = vsel %vm396, %v286, %v918
      %v955 = vsel %vm396, %v287, %v920
      %v956 = vsel %vm396, %v288, %v922
      %v957 = vsel %vm396, %v289, %v924
      %v958 = vsel %vm396, %v290, %v926
      %vm959 = vcmask 326656
      %960 = vst.msk [vmem:[%s145] sm:$0xff] %vm959, %v943
      %961 = vst.msk [vmem:[%s145 + $0x8] sm:$0xff] %vm959, %v944
      %962 = vst.msk [vmem:[%s145 + $0x10] sm:$0xff] %vm959, %v945
      %963 = vst.msk [vmem:[%s145 + $0x18] sm:$0xff] %vm959, %v946
      %964 = vst.msk [vmem:[%s145 + $0x20] sm:$0xff] %vm959, %v947
      %965 = vst.msk [vmem:[%s145 + $0x28] sm:$0xff] %vm959, %v948
      %966 = vst.msk [vmem:[%s145 + $0x30] sm:$0xff] %vm959, %v949
      %967 = vst.msk [vmem:[%s145 + $0x38] sm:$0xff] %vm959, %v950
      %968 = vst.msk [vmem:[%s145 + $0x40] sm:$0xff] %vm959, %v951
      %969 = vst.msk [vmem:[%s145 + $0x48] sm:$0xff] %vm959, %v952
      %970 = vst.msk [vmem:[%s145 + $0x50] sm:$0xff] %vm959, %v953
      %971 = vst.msk [vmem:[%s145 + $0x58] sm:$0xff] %vm959, %v954
      %972 = vst.msk [vmem:[%s145 + $0x60] sm:$0xff] %vm959, %v955
      %973 = vst.msk [vmem:[%s145 + $0x68] sm:$0xff] %vm959, %v956
      %974 = vst.msk [vmem:[%s145 + $0x70] sm:$0xff] %vm959, %v957
      %975 = vst.msk [vmem:[%s145 + $0x78] sm:$0xff] %vm959, %v958
      %s976 = smul.u32 16, %s13
      %p977 = scmp.lt.s32.totalorder %s976, 31
      %s978 = scalar_select %p977, %s976, 31
      %s979 = smul.addr %s978, 8
      %s980 = scalar_lea.vmem %s2, %s979
      // Predicated region
      $region29: #{tpu_custom_call.1} parent=27 // pred_check
        %p981 = pneg %p78
      $region30: #{tpu_custom_call.1} parent=27 // pred_check_branch
        %983 = sbr.rel (%p981) target = $region32
      $region31: #{tpu_custom_call.1} parent=27 // pred_region
        %s984 = smul.u32 16, %s13
      $region32: #{tpu_custom_call.1} parent=27 // pred_fallthru
        _
    $region28: #{tpu_custom_call.1} parent=5 // pred_fallthru
      _
    %p985 = scmp.le.s32.totalorder 2, %s8
    // Predicated region
    $region33: #{tpu_custom_call.1} parent=5 // pred_check
      %p986 = pneg %p985
    $region34: #{tpu_custom_call.1} parent=5 // pred_check_branch
      %988 = sbr.rel (%p986) target = $region36
    $region35: #{tpu_custom_call.1} parent=5 // pred_region
      %s989 = ssub.s32 %s8, 2
      // Predicated region
      $region37: #{tpu_custom_call.1} parent=35 // pred_check
        %p990 = pneg %p84
      $region38: #{tpu_custom_call.1} parent=35 // pred_check_branch
        %992 = sbr.rel (%p990) target = $region40
      $region39: #{tpu_custom_call.1} parent=35 // pred_region
        %s993 = smul.u32 16, %s14
        %p994 = scmp.lt.s32.totalorder %s993, 31
        %s995 = scalar_select %p994, %s993, 31
        %s996 = smul.addr %s995, 8
        %s997 = scalar_lea.vmem %s2, %s996
      $region40: #{tpu_custom_call.1} parent=35 // pred_fallthru
        _
    $region36: #{tpu_custom_call.1} parent=5 // pred_fallthru
      _
  $region6: #{tpu_custom_call.1} parent=0 // loop_footer
    %s12 = sadd.s32 1, %s8
  $region7: #{tpu_custom_call.1} parent=0 // loop_footer_branch
    %7 = sbr.rel target = $region3
  $region8: #{tpu_custom_call.1} parent=0 // loop_exit
    _

</llo_original>
